<compile_context>
chip_gen: v7x
topology: tpu7x:2x2x1
jax: 0.10.0
libtpu: 0.0.40
codegen_flags: <defaults>
</compile_context>

<pallas_src>
import functools
import math

import jax
import jax.numpy as jnp
from jax import lax
from jax.experimental import pallas as pl
from jax.experimental.pallas import tpu as pltpu


def _round_up(x, m):
    return ((x + m - 1) // m) * m


# ----------------------------------------------------------------------------
# Tile selection: keep the per-step footprint inside a per-generation VMEM
# budget; prefer wide-M / short-Co tiles so the accumulator stays in vregs.
# ----------------------------------------------------------------------------
def _pick_tiles(ci, co, m, *, tm=None, weight_bytes=4):
    # Per-generation VMEM budgets (v5e/v6e: 128 MiB physical; v7x: 64 MiB).
    try:
        vmem_cap = pltpu.get_tpu_info().vmem_capacity_bytes
    except Exception:
        vmem_cap = 64 << 20                      # conservative default
    if vmem_cap >= (96 << 20):                   # v5e / v6e
        budget = 24 << 20
        vmem_limit = 64 << 20
    else:                                        # v7x (64 MiB physical)
        budget = 14 << 20
        vmem_limit = 48 << 20

    ci_p = _round_up(ci, 8)
    co_p = _round_up(co, 8)

    # Short-Co tile: 2*tco*tm accumulator elements stay <= 16K f32 (16 vregs)
    # even at tm=1024, so the accumulator never spills.
    tco = 8 if co_p >= 8 else co_p

    def step_bytes(tci_, tm_):
        act = 2 * tci_ * tm_ * 4 * 2                       # re+im, f32, 2 bufs
        wgt = 2 * tci_ * tco * tm_ * weight_bytes * 2      # re+im, 2 bufs
        out = 2 * tco * tm_ * 4 * 2                        # re+im, f32, 2 bufs
        return act + wgt + out

    # M tile: largest of {1024,512,256,128} that is not grossly larger than M
    # and leaves room for at least an 8-deep Ci tile.  M is padded with
    # round-up (no divisor matching), wasting at most one tile of M.
    if tm is None:
        m128 = _round_up(m, 128)
        tm = 128
        for cand in (1024, 512, 256, 128):
            if cand <= max(m128, 128) and step_bytes(8, cand) <= budget:
                tm = cand
                break
    else:
        assert tm % 128 == 0, "M tile must be a multiple of 128 lanes"

    # Ci tile (reduction axis): largest sublane-aligned chunk within budget.
    tci = 8
    for cand in (ci_p, 256, 128, 96, 64, 48, 32, 24, 16, 8):
        if cand <= ci_p and cand % 8 == 0 and step_bytes(cand, tm) <= budget:
            tci = cand
            break

    ci_pad = _round_up(ci_p, tci)
    mp = _round_up(m, tm)
    return dict(tco=tco, tci=tci, tm=tm, co_p=co_p, ci_pad=ci_pad, mp=mp,
                vmem_limit=vmem_limit)


# ----------------------------------------------------------------------------
# Pallas kernel: complex "diagonal" contraction
#   out[b, o, m] = sum_i a[b, i, m] * w[i, o, m]   (complex numbers)
# i.e. the einsum "bixy,ioxy->boxy" of makani's _contract_diagonal with the
# spectral (x, y) dims flattened into the lane axis m.
#
# Per grid step (batch dim squeezed away):
#   ar/ai : (TCi, TM)        activation tile (real / imag planes)
#   wr/wi : (TCi, TCo, TM)   weight tile
#   or/oi : (TCo, TM)        output tile (also the cross-Ci-tile accumulator)
# ----------------------------------------------------------------------------
def _diag_contract_kernel(ar_ref, ai_ref, wr_ref, wi_ref, or_ref, oi_ref):
    tci, tco, tm = wr_ref.shape

    def mac(i, carry):
        acc_r, acc_i = carry
        # (1, TM) activation loads; broadcast over the TCo sublanes happens
        # implicitly in the multiply (2 vld per input channel instead of 4 —
        # the vld slot was binding on v5e with the materialized broadcast).
        a_r = ar_ref[pl.ds(i, 1), :]
        a_i = ai_ref[pl.ds(i, 1), :]
        w_r = wr_ref[i].astype(jnp.float32)      # (TCo, TM)
        w_i = wi_ref[i].astype(jnp.float32)
        acc_r = acc_r + (a_r * w_r - a_i * w_i)
        acc_i = acc_i + (a_r * w_i + a_i * w_r)
        return acc_r, acc_i

    # Register-resident accumulator within a grid step (2*tco*tm <= 16 vregs).
    acc_r = jnp.zeros((tco, tm), jnp.float32)
    acc_i = jnp.zeros((tco, tm), jnp.float32)
    if tci <= 32:
        for i in range(tci):                     # fully unrolled small-Ci path
            acc_r, acc_i = mac(i, (acc_r, acc_i))
    else:
        acc_r, acc_i = lax.fori_loop(0, tci, mac, (acc_r, acc_i), unroll=4)

    # Ci reduction grid axis (innermost): output block is resident across it.
    ici = pl.program_id(3)

    @pl.when(ici == 0)
    def _():
        or_ref[...] = acc_r
        oi_ref[...] = acc_i

    @pl.when(ici != 0)
    def _():
        or_ref[...] = or_ref[...] + acc_r
        oi_ref[...] = oi_ref[...] + acc_i


# ----------------------------------------------------------------------------
# pallas_call wrapper
# ----------------------------------------------------------------------------
def pallas_diagonal_contract(a_re, a_im, w_re, w_im, *, tci, tco, tm,
                             vmem_limit):
    """a_*: (B, Ci_pad, Mp) f32, w_*: (Ci_pad, Co_p, Mp) -> (B, Co_p, Mp) f32 x2."""
    B, ci_pad, mp = a_re.shape
    co_p = w_re.shape[1]
    assert mp % tm == 0 and co_p % tco == 0 and ci_pad % tci == 0
    n_ct, n_mt, n_it = co_p // tco, mp // tm, ci_pad // tci

    # Grid order: (co-tile, m-tile, batch, ci-tile).  The Ci reduction is
    # innermost ("arbitrary"); when Ci fits a single tile, consecutive batch
    # steps reuse the resident weight tile (its block index is b-independent).
    grid = (n_ct, n_mt, B, n_it)

    a_spec = pl.BlockSpec((pl.Squeezed(), tci, tm), lambda c, m, b, i: (b, i, m))
    w_spec = pl.BlockSpec((tci, tco, tm), lambda c, m, b, i: (i, c, m))
    o_spec = pl.BlockSpec((pl.Squeezed(), tco, tm), lambda c, m, b, i: (b, c, m))

    wbytes = jnp.dtype(w_re.dtype).itemsize
    flops = int(8 * B * ci_pad * co_p * mp)
    bytes_accessed = int(2 * 4 * B * ci_pad * mp
                         + 2 * wbytes * ci_pad * co_p * mp * (B if n_it > 1 else 1)
                         + 2 * 4 * B * co_p * mp)

    out_shape = (jax.ShapeDtypeStruct((B, co_p, mp), jnp.float32),
                 jax.ShapeDtypeStruct((B, co_p, mp), jnp.float32))

    return pl.pallas_call(
        _diag_contract_kernel,
        out_shape=out_shape,
        grid=grid,
        in_specs=[a_spec, a_spec, w_spec, w_spec],
        out_specs=(o_spec, o_spec),
        compiler_params=pltpu.CompilerParams(
            # Co/M tiles parallel (v7x megacore shards on Co, not batch, so
            # total weight HBM traffic is unchanged); batch + Ci reduction
            # are "arbitrary" (Ci MUST be arbitrary: output-resident accum).
            dimension_semantics=("parallel", "parallel", "arbitrary",
                                 "arbitrary"),
            vmem_limit_bytes=vmem_limit,
        ),
        cost_estimate=pl.CostEstimate(flops=flops, transcendentals=0,
                                      bytes_accessed=bytes_accessed),
    )(a_re, a_im, w_re, w_im)


# ----------------------------------------------------------------------------
# Forward pass (jitted); FFT transforms stay in plain JAX glue.
# ----------------------------------------------------------------------------
def _spectral_conv_forward(x, w_re_flat, w_im_flat, *, out_channels, nlat,
                           nlon, ci_pad, mp, tci, tco, tm, vmem_limit):
    dtype = x.dtype
    residual = x
    xf = x.astype(jnp.float32)

    # TODO(synk): the spectral transform (SHT / RealFFT2) has no clean Pallas
    # primitive; it stays as plain-JAX FFTs, matching the autocast-disabled
    # float32 transform in the PyTorch module.
    xhat = jnp.fft.rfft2(xf, norm="ortho")            # (B, Ci, H, W//2+1) c64

    B, Ci, H, Wm = xhat.shape
    M = H * Wm
    a_re = jnp.real(xhat).reshape(B, Ci, M)
    a_im = jnp.imag(xhat).reshape(B, Ci, M)
    pad_ci = ci_pad - Ci
    pad_m = mp - M
    a_re = jnp.pad(a_re, ((0, 0), (0, pad_ci), (0, pad_m)))
    a_im = jnp.pad(a_im, ((0, 0), (0, pad_ci), (0, pad_m)))

    o_re, o_im = pallas_diagonal_contract(a_re, a_im, w_re_flat, w_im_flat,
                                          tci=tci, tco=tco, tm=tm,
                                          vmem_limit=vmem_limit)

    xp = (o_re[:, :out_channels, :M] + 1j * o_im[:, :out_channels, :M]
          ).reshape(B, out_channels, H, Wm)
    x_out = jnp.fft.irfft2(xp, s=(nlat, nlon), norm="ortho")

    # bias=False in this configuration
    return x_out.astype(dtype), residual


# ----------------------------------------------------------------------------
# Module wrapper
# ----------------------------------------------------------------------------
class FactorizedSpectralConvPallas:
    def __init__(self, in_channels, out_channels, nlat, nlon, gain=1.0,
                 tm=None, weight_dtype=jnp.float32, key=None):
        if key is None:
            key = jax.random.PRNGKey(0)
        self.in_channels = in_channels
        self.out_channels = out_channels
        self.nlat = nlat
        self.nlon = nlon
        # full spectral modes (RealFFT2 with no truncation)
        self.modes_lat = nlat
        self.modes_lon = nlon // 2 + 1
        # forward and inverse transforms share the grid -> no residual rescale
        self.scale_residual = False

        # ComplexDense weight: [Ci, Co, modes_lat, modes_lon], complex,
        # normal init with std = sqrt(gain / in_channels)
        scale = math.sqrt(gain / float(in_channels))
        k_re, k_im = jax.random.split(key)
        wshape = (in_channels, out_channels, self.modes_lat, self.modes_lon)
        self.w_re = scale * jax.random.normal(k_re, wshape, jnp.float32)
        self.w_im = scale * jax.random.normal(k_im, wshape, jnp.float32)

        M = self.modes_lat * self.modes_lon
        cfg = _pick_tiles(in_channels, out_channels, M, tm=tm,
                          weight_bytes=jnp.dtype(weight_dtype).itemsize)
        self.tco, self.tci, self.tm = cfg["tco"], cfg["tci"], cfg["tm"]
        self.co_p, self.ci_pad, self.mp = cfg["co_p"], cfg["ci_pad"], cfg["mp"]
        self.vmem_limit = cfg["vmem_limit"]

        # Kernel-side layout precomputed ONCE (Ci/Co padded to sublane
        # multiples, M padded to the lane tile).  Pass weight_dtype=bfloat16
        # when the contraction is HBM-bound on weight streaming (small per
        # device batch, v6e); the kernel upcasts to f32 before the MAC.
        def _prep(w):
            w = w.reshape(in_channels, out_channels, M)
            w = jnp.pad(w, ((0, self.ci_pad - in_channels),
                            (0, self.co_p - out_channels),
                            (0, self.mp - M)))
            return w.astype(weight_dtype)

        self.w_re_flat = _prep(self.w_re)
        self.w_im_flat = _prep(self.w_im)

        self._forward = jax.jit(functools.partial(
            _spectral_conv_forward,
            out_channels=out_channels, nlat=nlat, nlon=nlon,
            ci_pad=self.ci_pad, mp=self.mp, tci=self.tci, tco=self.tco,
            tm=self.tm, vmem_limit=self.vmem_limit))

    def __call__(self, x):
        # x: (B, C_in, H, W)  NCHW, any float dtype
        return self._forward(x, self.w_re_flat, self.w_im_flat)


# ----------------------------------------------------------------------------
# Reference (pure JAX) for verification
# ----------------------------------------------------------------------------
def reference_forward(module, x):
    dtype = x.dtype
    residual = x
    xhat = jnp.fft.rfft2(x.astype(jnp.float32), norm="ortho")
    w = module.w_re + 1j * module.w_im
    xp = jnp.einsum("bixy,ioxy->boxy", xhat, w)
    x_out = jnp.fft.irfft2(xp, s=(module.nlat, module.nlon), norm="ortho")
    return x_out.astype(dtype), residual


if __name__ == "__main__":
    key = jax.random.PRNGKey(0)
    k_x, k_w = jax.random.split(key)

    B, Cin, Cout, H, W = 2, 4, 4, 16, 16
    x = jax.random.normal(k_x, (B, Cin, H, W), jnp.float32)

    # tm=128 so the toy case exercises multiple M-tiles (M=144 -> Mp=256, 2 tiles)
    module = FactorizedSpectralConvPallas(Cin, Cout, nlat=H, nlon=W, gain=1.0,
                                          tm=128, key=k_w)

    out, res = module(x)
    out = jax.block_until_ready(out)
    res = jax.block_until_ready(res)

    ref_out, ref_res = reference_forward(module, x)

    assert out.shape == (B, Cout, H, W)
    assert res.shape == x.shape
    assert jnp.allclose(out, ref_out, atol=1e-4, rtol=1e-4)
    assert jnp.allclose(res, ref_res)

    print("KERNEL_OK")
</pallas_src>

<mosaic_0001>
module attributes {stable_mosaic.version = 11 : i64} {
  func.func @_diag_contract_kernel(%arg0: i32, %arg1: i32, %arg2: i32, %arg3: i32, %arg4: memref<1x8x128xf32, #tpu.memory_space<vmem>>, %arg5: memref<1x8x128xf32, #tpu.memory_space<vmem>>, %arg6: memref<8x8x128xf32, #tpu.memory_space<vmem>>, %arg7: memref<8x8x128xf32, #tpu.memory_space<vmem>>, %arg8: memref<1x8x128xf32, #tpu.memory_space<vmem>>, %arg9: memref<1x8x128xf32, #tpu.memory_space<vmem>>) attributes {dimension_semantics = [#tpu.dimension_semantics<parallel>, #tpu.dimension_semantics<parallel>, #tpu.dimension_semantics<arbitrary>, #tpu.dimension_semantics<arbitrary>], iteration_bounds = array<i64: 1, 2, 2, 1>, scalar_prefetch = 0 : i64, scratch_operands = 0 : i64, tpu.core_type = #tpu.core_type<tc>, window_params = [{transform_indices = @transform_0, window_bounds = array<i64: 1, 8, 128>}, {transform_indices = @transform_1, window_bounds = array<i64: 1, 8, 128>}, {transform_indices = @transform_2, window_bounds = array<i64: 8, 8, 128>}, {transform_indices = @transform_3, window_bounds = array<i64: 8, 8, 128>}, {transform_indices = @transform_4, window_bounds = array<i64: 1, 8, 128>}, {transform_indices = @transform_5, window_bounds = array<i64: 1, 8, 128>}]} {
    %cst = arith.constant 0.000000e+00 : f32
    %0 = vector.broadcast %cst : f32 to vector<8x128xf32>
    %cst_0 = arith.constant 0.000000e+00 : f32
    %1 = vector.broadcast %cst_0 : f32 to vector<8x128xf32>
    %c0 = arith.constant 0 : index
    %c0_1 = arith.constant 0 : index
    %c0_2 = arith.constant 0 : index
    %2 = vector.load %arg4[%c0, %c0_1, %c0_2] : memref<1x8x128xf32, #tpu.memory_space<vmem>>, vector<1x1x128xf32>
    %3 = vector.shape_cast %2 : vector<1x1x128xf32> to vector<1x128xf32>
    %c0_3 = arith.constant 0 : index
    %c0_4 = arith.constant 0 : index
    %c0_5 = arith.constant 0 : index
    %4 = vector.load %arg5[%c0_3, %c0_4, %c0_5] : memref<1x8x128xf32, #tpu.memory_space<vmem>>, vector<1x1x128xf32>
    %5 = vector.shape_cast %4 : vector<1x1x128xf32> to vector<1x128xf32>
    %c0_6 = arith.constant 0 : index
    %c0_7 = arith.constant 0 : index
    %c0_8 = arith.constant 0 : index
    %6 = vector.load %arg6[%c0_6, %c0_7, %c0_8] : memref<8x8x128xf32, #tpu.memory_space<vmem>>, vector<1x8x128xf32>
    %7 = vector.shape_cast %6 : vector<1x8x128xf32> to vector<8x128xf32>
    %c0_9 = arith.constant 0 : index
    %c0_10 = arith.constant 0 : index
    %c0_11 = arith.constant 0 : index
    %8 = vector.load %arg7[%c0_9, %c0_10, %c0_11] : memref<8x8x128xf32, #tpu.memory_space<vmem>>, vector<1x8x128xf32>
    %9 = vector.shape_cast %8 : vector<1x8x128xf32> to vector<8x128xf32>
    %10 = vector.broadcast %3 : vector<1x128xf32> to vector<8x128xf32>
    %11 = arith.mulf %10, %7 : vector<8x128xf32>
    %12 = vector.broadcast %5 : vector<1x128xf32> to vector<8x128xf32>
    %13 = arith.mulf %12, %9 : vector<8x128xf32>
    %14 = arith.subf %11, %13 : vector<8x128xf32>
    %15 = arith.addf %0, %14 : vector<8x128xf32>
    %16 = vector.broadcast %3 : vector<1x128xf32> to vector<8x128xf32>
    %17 = arith.mulf %16, %9 : vector<8x128xf32>
    %18 = vector.broadcast %5 : vector<1x128xf32> to vector<8x128xf32>
    %19 = arith.mulf %18, %7 : vector<8x128xf32>
    %20 = arith.addf %17, %19 : vector<8x128xf32>
    %21 = arith.addf %1, %20 : vector<8x128xf32>
    %c0_12 = arith.constant 0 : index
    %c1 = arith.constant 1 : index
    %c0_13 = arith.constant 0 : index
    %22 = vector.load %arg4[%c0_12, %c1, %c0_13] : memref<1x8x128xf32, #tpu.memory_space<vmem>>, vector<1x1x128xf32>
    %23 = vector.shape_cast %22 : vector<1x1x128xf32> to vector<1x128xf32>
    %c0_14 = arith.constant 0 : index
    %c1_15 = arith.constant 1 : index
    %c0_16 = arith.constant 0 : index
    %24 = vector.load %arg5[%c0_14, %c1_15, %c0_16] : memref<1x8x128xf32, #tpu.memory_space<vmem>>, vector<1x1x128xf32>
    %25 = vector.shape_cast %24 : vector<1x1x128xf32> to vector<1x128xf32>
    %c1_17 = arith.constant 1 : index
    %c0_18 = arith.constant 0 : index
    %c0_19 = arith.constant 0 : index
    %26 = vector.load %arg6[%c1_17, %c0_18, %c0_19] : memref<8x8x128xf32, #tpu.memory_space<vmem>>, vector<1x8x128xf32>
    %27 = vector.shape_cast %26 : vector<1x8x128xf32> to vector<8x128xf32>
    %c1_20 = arith.constant 1 : index
    %c0_21 = arith.constant 0 : index
    %c0_22 = arith.constant 0 : index
    %28 = vector.load %arg7[%c1_20, %c0_21, %c0_22] : memref<8x8x128xf32, #tpu.memory_space<vmem>>, vector<1x8x128xf32>
    %29 = vector.shape_cast %28 : vector<1x8x128xf32> to vector<8x128xf32>
    %30 = vector.broadcast %23 : vector<1x128xf32> to vector<8x128xf32>
    %31 = arith.mulf %30, %27 : vector<8x128xf32>
    %32 = vector.broadcast %25 : vector<1x128xf32> to vector<8x128xf32>
    %33 = arith.mulf %32, %29 : vector<8x128xf32>
    %34 = arith.subf %31, %33 : vector<8x128xf32>
    %35 = arith.addf %15, %34 : vector<8x128xf32>
    %36 = vector.broadcast %23 : vector<1x128xf32> to vector<8x128xf32>
    %37 = arith.mulf %36, %29 : vector<8x128xf32>
    %38 = vector.broadcast %25 : vector<1x128xf32> to vector<8x128xf32>
    %39 = arith.mulf %38, %27 : vector<8x128xf32>
    %40 = arith.addf %37, %39 : vector<8x128xf32>
    %41 = arith.addf %21, %40 : vector<8x128xf32>
    %c0_23 = arith.constant 0 : index
    %c2 = arith.constant 2 : index
    %c0_24 = arith.constant 0 : index
    %42 = vector.load %arg4[%c0_23, %c2, %c0_24] : memref<1x8x128xf32, #tpu.memory_space<vmem>>, vector<1x1x128xf32>
    %43 = vector.shape_cast %42 : vector<1x1x128xf32> to vector<1x128xf32>
    %c0_25 = arith.constant 0 : index
    %c2_26 = arith.constant 2 : index
    %c0_27 = arith.constant 0 : index
    %44 = vector.load %arg5[%c0_25, %c2_26, %c0_27] : memref<1x8x128xf32, #tpu.memory_space<vmem>>, vector<1x1x128xf32>
    %45 = vector.shape_cast %44 : vector<1x1x128xf32> to vector<1x128xf32>
    %c2_28 = arith.constant 2 : index
    %c0_29 = arith.constant 0 : index
    %c0_30 = arith.constant 0 : index
    %46 = vector.load %arg6[%c2_28, %c0_29, %c0_30] : memref<8x8x128xf32, #tpu.memory_space<vmem>>, vector<1x8x128xf32>
    %47 = vector.shape_cast %46 : vector<1x8x128xf32> to vector<8x128xf32>
    %c2_31 = arith.constant 2 : index
    %c0_32 = arith.constant 0 : index
    %c0_33 = arith.constant 0 : index
    %48 = vector.load %arg7[%c2_31, %c0_32, %c0_33] : memref<8x8x128xf32, #tpu.memory_space<vmem>>, vector<1x8x128xf32>
    %49 = vector.shape_cast %48 : vector<1x8x128xf32> to vector<8x128xf32>
    %50 = vector.broadcast %43 : vector<1x128xf32> to vector<8x128xf32>
    %51 = arith.mulf %50, %47 : vector<8x128xf32>
    %52 = vector.broadcast %45 : vector<1x128xf32> to vector<8x128xf32>
    %53 = arith.mulf %52, %49 : vector<8x128xf32>
    %54 = arith.subf %51, %53 : vector<8x128xf32>
    %55 = arith.addf %35, %54 : vector<8x128xf32>
    %56 = vector.broadcast %43 : vector<1x128xf32> to vector<8x128xf32>
    %57 = arith.mulf %56, %49 : vector<8x128xf32>
    %58 = vector.broadcast %45 : vector<1x128xf32> to vector<8x128xf32>
    %59 = arith.mulf %58, %47 : vector<8x128xf32>
    %60 = arith.addf %57, %59 : vector<8x128xf32>
    %61 = arith.addf %41, %60 : vector<8x128xf32>
    %c0_34 = arith.constant 0 : index
    %c3 = arith.constant 3 : index
    %c0_35 = arith.constant 0 : index
    %62 = vector.load %arg4[%c0_34, %c3, %c0_35] : memref<1x8x128xf32, #tpu.memory_space<vmem>>, vector<1x1x128xf32>
    %63 = vector.shape_cast %62 : vector<1x1x128xf32> to vector<1x128xf32>
    %c0_36 = arith.constant 0 : index
    %c3_37 = arith.constant 3 : index
    %c0_38 = arith.constant 0 : index
    %64 = vector.load %arg5[%c0_36, %c3_37, %c0_38] : memref<1x8x128xf32, #tpu.memory_space<vmem>>, vector<1x1x128xf32>
    %65 = vector.shape_cast %64 : vector<1x1x128xf32> to vector<1x128xf32>
    %c3_39 = arith.constant 3 : index
    %c0_40 = arith.constant 0 : index
    %c0_41 = arith.constant 0 : index
    %66 = vector.load %arg6[%c3_39, %c0_40, %c0_41] : memref<8x8x128xf32, #tpu.memory_space<vmem>>, vector<1x8x128xf32>
    %67 = vector.shape_cast %66 : vector<1x8x128xf32> to vector<8x128xf32>
    %c3_42 = arith.constant 3 : index
    %c0_43 = arith.constant 0 : index
    %c0_44 = arith.constant 0 : index
    %68 = vector.load %arg7[%c3_42, %c0_43, %c0_44] : memref<8x8x128xf32, #tpu.memory_space<vmem>>, vector<1x8x128xf32>
    %69 = vector.shape_cast %68 : vector<1x8x128xf32> to vector<8x128xf32>
    %70 = vector.broadcast %63 : vector<1x128xf32> to vector<8x128xf32>
    %71 = arith.mulf %70, %67 : vector<8x128xf32>
    %72 = vector.broadcast %65 : vector<1x128xf32> to vector<8x128xf32>
    %73 = arith.mulf %72, %69 : vector<8x128xf32>
    %74 = arith.subf %71, %73 : vector<8x128xf32>
    %75 = arith.addf %55, %74 : vector<8x128xf32>
    %76 = vector.broadcast %63 : vector<1x128xf32> to vector<8x128xf32>
    %77 = arith.mulf %76, %69 : vector<8x128xf32>
    %78 = vector.broadcast %65 : vector<1x128xf32> to vector<8x128xf32>
    %79 = arith.mulf %78, %67 : vector<8x128xf32>
    %80 = arith.addf %77, %79 : vector<8x128xf32>
    %81 = arith.addf %61, %80 : vector<8x128xf32>
    %c0_45 = arith.constant 0 : index
    %c4 = arith.constant 4 : index
    %c0_46 = arith.constant 0 : index
    %82 = vector.load %arg4[%c0_45, %c4, %c0_46] : memref<1x8x128xf32, #tpu.memory_space<vmem>>, vector<1x1x128xf32>
    %83 = vector.shape_cast %82 : vector<1x1x128xf32> to vector<1x128xf32>
    %c0_47 = arith.constant 0 : index
    %c4_48 = arith.constant 4 : index
    %c0_49 = arith.constant 0 : index
    %84 = vector.load %arg5[%c0_47, %c4_48, %c0_49] : memref<1x8x128xf32, #tpu.memory_space<vmem>>, vector<1x1x128xf32>
    %85 = vector.shape_cast %84 : vector<1x1x128xf32> to vector<1x128xf32>
    %c4_50 = arith.constant 4 : index
    %c0_51 = arith.constant 0 : index
    %c0_52 = arith.constant 0 : index
    %86 = vector.load %arg6[%c4_50, %c0_51, %c0_52] : memref<8x8x128xf32, #tpu.memory_space<vmem>>, vector<1x8x128xf32>
    %87 = vector.shape_cast %86 : vector<1x8x128xf32> to vector<8x128xf32>
    %c4_53 = arith.constant 4 : index
    %c0_54 = arith.constant 0 : index
    %c0_55 = arith.constant 0 : index
    %88 = vector.load %arg7[%c4_53, %c0_54, %c0_55] : memref<8x8x128xf32, #tpu.memory_space<vmem>>, vector<1x8x128xf32>
    %89 = vector.shape_cast %88 : vector<1x8x128xf32> to vector<8x128xf32>
    %90 = vector.broadcast %83 : vector<1x128xf32> to vector<8x128xf32>
    %91 = arith.mulf %90, %87 : vector<8x128xf32>
    %92 = vector.broadcast %85 : vector<1x128xf32> to vector<8x128xf32>
    %93 = arith.mulf %92, %89 : vector<8x128xf32>
    %94 = arith.subf %91, %93 : vector<8x128xf32>
    %95 = arith.addf %75, %94 : vector<8x128xf32>
    %96 = vector.broadcast %83 : vector<1x128xf32> to vector<8x128xf32>
    %97 = arith.mulf %96, %89 : vector<8x128xf32>
    %98 = vector.broadcast %85 : vector<1x128xf32> to vector<8x128xf32>
    %99 = arith.mulf %98, %87 : vector<8x128xf32>
    %100 = arith.addf %97, %99 : vector<8x128xf32>
    %101 = arith.addf %81, %100 : vector<8x128xf32>
    %c0_56 = arith.constant 0 : index
    %c5 = arith.constant 5 : index
    %c0_57 = arith.constant 0 : index
    %102 = vector.load %arg4[%c0_56, %c5, %c0_57] : memref<1x8x128xf32, #tpu.memory_space<vmem>>, vector<1x1x128xf32>
    %103 = vector.shape_cast %102 : vector<1x1x128xf32> to vector<1x128xf32>
    %c0_58 = arith.constant 0 : index
    %c5_59 = arith.constant 5 : index
    %c0_60 = arith.constant 0 : index
    %104 = vector.load %arg5[%c0_58, %c5_59, %c0_60] : memref<1x8x128xf32, #tpu.memory_space<vmem>>, vector<1x1x128xf32>
    %105 = vector.shape_cast %104 : vector<1x1x128xf32> to vector<1x128xf32>
    %c5_61 = arith.constant 5 : index
    %c0_62 = arith.constant 0 : index
    %c0_63 = arith.constant 0 : index
    %106 = vector.load %arg6[%c5_61, %c0_62, %c0_63] : memref<8x8x128xf32, #tpu.memory_space<vmem>>, vector<1x8x128xf32>
    %107 = vector.shape_cast %106 : vector<1x8x128xf32> to vector<8x128xf32>
    %c5_64 = arith.constant 5 : index
    %c0_65 = arith.constant 0 : index
    %c0_66 = arith.constant 0 : index
    %108 = vector.load %arg7[%c5_64, %c0_65, %c0_66] : memref<8x8x128xf32, #tpu.memory_space<vmem>>, vector<1x8x128xf32>
    %109 = vector.shape_cast %108 : vector<1x8x128xf32> to vector<8x128xf32>
    %110 = vector.broadcast %103 : vector<1x128xf32> to vector<8x128xf32>
    %111 = arith.mulf %110, %107 : vector<8x128xf32>
    %112 = vector.broadcast %105 : vector<1x128xf32> to vector<8x128xf32>
    %113 = arith.mulf %112, %109 : vector<8x128xf32>
    %114 = arith.subf %111, %113 : vector<8x128xf32>
    %115 = arith.addf %95, %114 : vector<8x128xf32>
    %116 = vector.broadcast %103 : vector<1x128xf32> to vector<8x128xf32>
    %117 = arith.mulf %116, %109 : vector<8x128xf32>
    %118 = vector.broadcast %105 : vector<1x128xf32> to vector<8x128xf32>
    %119 = arith.mulf %118, %107 : vector<8x128xf32>
    %120 = arith.addf %117, %119 : vector<8x128xf32>
    %121 = arith.addf %101, %120 : vector<8x128xf32>
    %c0_67 = arith.constant 0 : index
    %c6 = arith.constant 6 : index
    %c0_68 = arith.constant 0 : index
    %122 = vector.load %arg4[%c0_67, %c6, %c0_68] : memref<1x8x128xf32, #tpu.memory_space<vmem>>, vector<1x1x128xf32>
    %123 = vector.shape_cast %122 : vector<1x1x128xf32> to vector<1x128xf32>
    %c0_69 = arith.constant 0 : index
    %c6_70 = arith.constant 6 : index
    %c0_71 = arith.constant 0 : index
    %124 = vector.load %arg5[%c0_69, %c6_70, %c0_71] : memref<1x8x128xf32, #tpu.memory_space<vmem>>, vector<1x1x128xf32>
    %125 = vector.shape_cast %124 : vector<1x1x128xf32> to vector<1x128xf32>
    %c6_72 = arith.constant 6 : index
    %c0_73 = arith.constant 0 : index
    %c0_74 = arith.constant 0 : index
    %126 = vector.load %arg6[%c6_72, %c0_73, %c0_74] : memref<8x8x128xf32, #tpu.memory_space<vmem>>, vector<1x8x128xf32>
    %127 = vector.shape_cast %126 : vector<1x8x128xf32> to vector<8x128xf32>
    %c6_75 = arith.constant 6 : index
    %c0_76 = arith.constant 0 : index
    %c0_77 = arith.constant 0 : index
    %128 = vector.load %arg7[%c6_75, %c0_76, %c0_77] : memref<8x8x128xf32, #tpu.memory_space<vmem>>, vector<1x8x128xf32>
    %129 = vector.shape_cast %128 : vector<1x8x128xf32> to vector<8x128xf32>
    %130 = vector.broadcast %123 : vector<1x128xf32> to vector<8x128xf32>
    %131 = arith.mulf %130, %127 : vector<8x128xf32>
    %132 = vector.broadcast %125 : vector<1x128xf32> to vector<8x128xf32>
    %133 = arith.mulf %132, %129 : vector<8x128xf32>
    %134 = arith.subf %131, %133 : vector<8x128xf32>
    %135 = arith.addf %115, %134 : vector<8x128xf32>
    %136 = vector.broadcast %123 : vector<1x128xf32> to vector<8x128xf32>
    %137 = arith.mulf %136, %129 : vector<8x128xf32>
    %138 = vector.broadcast %125 : vector<1x128xf32> to vector<8x128xf32>
    %139 = arith.mulf %138, %127 : vector<8x128xf32>
    %140 = arith.addf %137, %139 : vector<8x128xf32>
    %141 = arith.addf %121, %140 : vector<8x128xf32>
    %c0_78 = arith.constant 0 : index
    %c7 = arith.constant 7 : index
    %c0_79 = arith.constant 0 : index
    %142 = vector.load %arg4[%c0_78, %c7, %c0_79] : memref<1x8x128xf32, #tpu.memory_space<vmem>>, vector<1x1x128xf32>
    %143 = vector.shape_cast %142 : vector<1x1x128xf32> to vector<1x128xf32>
    %c0_80 = arith.constant 0 : index
    %c7_81 = arith.constant 7 : index
    %c0_82 = arith.constant 0 : index
    %144 = vector.load %arg5[%c0_80, %c7_81, %c0_82] : memref<1x8x128xf32, #tpu.memory_space<vmem>>, vector<1x1x128xf32>
    %145 = vector.shape_cast %144 : vector<1x1x128xf32> to vector<1x128xf32>
    %c7_83 = arith.constant 7 : index
    %c0_84 = arith.constant 0 : index
    %c0_85 = arith.constant 0 : index
    %146 = vector.load %arg6[%c7_83, %c0_84, %c0_85] : memref<8x8x128xf32, #tpu.memory_space<vmem>>, vector<1x8x128xf32>
    %147 = vector.shape_cast %146 : vector<1x8x128xf32> to vector<8x128xf32>
    %c7_86 = arith.constant 7 : index
    %c0_87 = arith.constant 0 : index
    %c0_88 = arith.constant 0 : index
    %148 = vector.load %arg7[%c7_86, %c0_87, %c0_88] : memref<8x8x128xf32, #tpu.memory_space<vmem>>, vector<1x8x128xf32>
    %149 = vector.shape_cast %148 : vector<1x8x128xf32> to vector<8x128xf32>
    %150 = vector.broadcast %143 : vector<1x128xf32> to vector<8x128xf32>
    %151 = arith.mulf %150, %147 : vector<8x128xf32>
    %152 = vector.broadcast %145 : vector<1x128xf32> to vector<8x128xf32>
    %153 = arith.mulf %152, %149 : vector<8x128xf32>
    %154 = arith.subf %151, %153 : vector<8x128xf32>
    %155 = arith.addf %135, %154 : vector<8x128xf32>
    %156 = vector.broadcast %143 : vector<1x128xf32> to vector<8x128xf32>
    %157 = arith.mulf %156, %149 : vector<8x128xf32>
    %158 = vector.broadcast %145 : vector<1x128xf32> to vector<8x128xf32>
    %159 = arith.mulf %158, %147 : vector<8x128xf32>
    %160 = arith.addf %157, %159 : vector<8x128xf32>
    %161 = arith.addf %141, %160 : vector<8x128xf32>
    %c0_i32 = arith.constant 0 : i32
    %162 = arith.cmpi eq, %arg3, %c0_i32 : i32
    %163 = arith.extui %162 : i1 to i32
    %c0_i32_89 = arith.constant 0 : i32
    %164 = arith.cmpi ne, %163, %c0_i32_89 : i32
    scf.if %164 {
      %c0_92 = arith.constant 0 : index
      %c0_93 = arith.constant 0 : index
      %c0_94 = arith.constant 0 : index
      %168 = vector.load %arg8[%c0_92, %c0_93, %c0_94] : memref<1x8x128xf32, #tpu.memory_space<vmem>>, vector<1x8x128xf32>
      %169 = vector.shape_cast %168 : vector<1x8x128xf32> to vector<8x128xf32>
      %170 = vector.shape_cast %155 : vector<8x128xf32> to vector<1x8x128xf32>
      tpu.vector_store %arg8[%c0_92, %c0_93, %c0_94], %170 {strides = array<i32>} : memref<1x8x128xf32, #tpu.memory_space<vmem>>, vector<1x8x128xf32>,
      %c0_95 = arith.constant 0 : index
      %c0_96 = arith.constant 0 : index
      %c0_97 = arith.constant 0 : index
      %171 = vector.load %arg9[%c0_95, %c0_96, %c0_97] : memref<1x8x128xf32, #tpu.memory_space<vmem>>, vector<1x8x128xf32>
      %172 = vector.shape_cast %171 : vector<1x8x128xf32> to vector<8x128xf32>
      %173 = vector.shape_cast %161 : vector<8x128xf32> to vector<1x8x128xf32>
      tpu.vector_store %arg9[%c0_95, %c0_96, %c0_97], %173 {strides = array<i32>} : memref<1x8x128xf32, #tpu.memory_space<vmem>>, vector<1x8x128xf32>,
    } else {
    }
    %c0_i32_90 = arith.constant 0 : i32
    %165 = arith.cmpi ne, %arg3, %c0_i32_90 : i32
    %166 = arith.extui %165 : i1 to i32
    %c0_i32_91 = arith.constant 0 : i32
    %167 = arith.cmpi ne, %166, %c0_i32_91 : i32
    scf.if %167 {
      %c0_92 = arith.constant 0 : index
      %c0_93 = arith.constant 0 : index
      %c0_94 = arith.constant 0 : index
      %168 = vector.load %arg8[%c0_92, %c0_93, %c0_94] : memref<1x8x128xf32, #tpu.memory_space<vmem>>, vector<1x8x128xf32>
      %169 = vector.shape_cast %168 : vector<1x8x128xf32> to vector<8x128xf32>
      %170 = arith.addf %169, %155 : vector<8x128xf32>
      %c0_95 = arith.constant 0 : index
      %c0_96 = arith.constant 0 : index
      %c0_97 = arith.constant 0 : index
      %171 = vector.load %arg8[%c0_95, %c0_96, %c0_97] : memref<1x8x128xf32, #tpu.memory_space<vmem>>, vector<1x8x128xf32>
      %172 = vector.shape_cast %171 : vector<1x8x128xf32> to vector<8x128xf32>
      %173 = vector.shape_cast %170 : vector<8x128xf32> to vector<1x8x128xf32>
      tpu.vector_store %arg8[%c0_95, %c0_96, %c0_97], %173 {strides = array<i32>} : memref<1x8x128xf32, #tpu.memory_space<vmem>>, vector<1x8x128xf32>,
      %c0_98 = arith.constant 0 : index
      %c0_99 = arith.constant 0 : index
      %c0_100 = arith.constant 0 : index
      %174 = vector.load %arg9[%c0_98, %c0_99, %c0_100] : memref<1x8x128xf32, #tpu.memory_space<vmem>>, vector<1x8x128xf32>
      %175 = vector.shape_cast %174 : vector<1x8x128xf32> to vector<8x128xf32>
      %176 = arith.addf %175, %161 : vector<8x128xf32>
      %c0_101 = arith.constant 0 : index
      %c0_102 = arith.constant 0 : index
      %c0_103 = arith.constant 0 : index
      %177 = vector.load %arg9[%c0_101, %c0_102, %c0_103] : memref<1x8x128xf32, #tpu.memory_space<vmem>>, vector<1x8x128xf32>
      %178 = vector.shape_cast %177 : vector<1x8x128xf32> to vector<8x128xf32>
      %179 = vector.shape_cast %176 : vector<8x128xf32> to vector<1x8x128xf32>
      tpu.vector_store %arg9[%c0_101, %c0_102, %c0_103], %179 {strides = array<i32>} : memref<1x8x128xf32, #tpu.memory_space<vmem>>, vector<1x8x128xf32>,
    } else {
    }
    return
  }
  func.func @transform_0(%arg0: i32, %arg1: i32, %arg2: i32, %arg3: i32) -> (i32, i32, i32) {
    %c0_i32 = arith.constant 0 : i32
    return %arg2, %arg3, %arg1 : i32, i32, i32
  }
  func.func @transform_1(%arg0: i32, %arg1: i32, %arg2: i32, %arg3: i32) -> (i32, i32, i32) {
    %c0_i32 = arith.constant 0 : i32
    return %arg2, %arg3, %arg1 : i32, i32, i32
  }
  func.func @transform_2(%arg0: i32, %arg1: i32, %arg2: i32, %arg3: i32) -> (i32, i32, i32) {
    %c0_i32 = arith.constant 0 : i32
    return %arg3, %arg0, %arg1 : i32, i32, i32
  }
  func.func @transform_3(%arg0: i32, %arg1: i32, %arg2: i32, %arg3: i32) -> (i32, i32, i32) {
    %c0_i32 = arith.constant 0 : i32
    return %arg3, %arg0, %arg1 : i32, i32, i32
  }
  func.func @transform_4(%arg0: i32, %arg1: i32, %arg2: i32, %arg3: i32) -> (i32, i32, i32) {
    %c0_i32 = arith.constant 0 : i32
    return %arg2, %arg0, %arg1 : i32, i32, i32
  }
  func.func @transform_5(%arg0: i32, %arg1: i32, %arg2: i32, %arg3: i32) -> (i32, i32, i32) {
    %c0_i32 = arith.constant 0 : i32
    return %arg2, %arg0, %arg1 : i32, i32, i32
  }
}

</mosaic_0001>

<llo_original>
// kernel: reverse.1
$region0: #{reverse.1}
  %s0 = inlined_call_operand.vmem [shape: f32[2,4,16,7], index: 0, kind: input, shape index: {}]
  %s1 = inlined_call_operand.vmem [shape: f32[2,4,16,7], index: 1, kind: output, shape index: {}]
  $region1: #{reverse.1} parent=0
    #allocation0 [shape = 'u8[65536]{0}', space=vmem, size = 0x10000, scoped, tag = 'operand span for operand 0']
    #allocation1 [shape = 'u8[32768]{0}', space=vmem, size = 0x8000, scoped, tag = 'operand span for operand 1']
    %s2 = scalar_lea.vmem [#allocation0], 8
    // Predicated region
    $region2: #{reverse.1} parent=1 // pred_check
      _
    $region3: #{reverse.1} parent=1 // pred_check_branch
      %4 = sbr.rel (0) target = $region5
    $region4: #{reverse.1} parent=1 // pred_region
      // Predicated region
      $region6: #{reverse.1} parent=4 // pred_check
        _
      $region7: #{reverse.1} parent=4 // pred_check_branch
        %6 = sbr.rel (0) target = $region9
      $region8: #{reverse.1} parent=4 // pred_region
        // Predicated region
        $region21: #{reverse.1} parent=8 // pred_check
          _
        $region22: #{reverse.1} parent=8 // pred_check_branch
          %35 = sbr.rel (0) target = $region24
        $region23: #{reverse.1} parent=8 // pred_region
          loop: start=0, step=1, limit=1
          $region25: #{reverse.1} parent=23 // loop_pre_header
            _
          $region26: #{reverse.1} parent=23 // loop_header
            %s37 = sphi 0, %s41
            %p38 = scmp.ge.s32.totalorder %s37, 1
            %s42 = sphi %s0, %s0
            %s43 = sphi %s2, %s2
          $region27: #{reverse.1} parent=23 // loop_header_branch
            %40 = sbr.rel (%p38) target = $region31
          $region28: #{reverse.1} parent=23 // loop_body
            %v44 = vld [vmem:[%s42] sm:$0xff]
            %45 = vst [vmem:[%s43] sm:$0xff] %v44
            %v46 = vld [vmem:[%s42 + $0x8] sm:$0xff]
            %47 = vst [vmem:[%s43 + $0x10] sm:$0xff] %v46
            %v48 = vld [vmem:[%s42 + $0x10] sm:$0xff]
            %49 = vst [vmem:[%s43 + $0x20] sm:$0xff] %v48
            %v50 = vld [vmem:[%s42 + $0x18] sm:$0xff]
            %51 = vst [vmem:[%s43 + $0x30] sm:$0xff] %v50
            %v52 = vld [vmem:[%s42 + $0x20] sm:$0xff]
            %53 = vst [vmem:[%s43 + $0x40] sm:$0xff] %v52
            %v54 = vld [vmem:[%s42 + $0x28] sm:$0xff]
            %55 = vst [vmem:[%s43 + $0x50] sm:$0xff] %v54
            %v56 = vld [vmem:[%s42 + $0x30] sm:$0xff]
            %57 = vst [vmem:[%s43 + $0x60] sm:$0xff] %v56
            %v58 = vld [vmem:[%s42 + $0x38] sm:$0xff]
            %59 = vst [vmem:[%s43 + $0x70] sm:$0xff] %v58
          $region29: #{reverse.1} parent=23 // loop_footer
            %s41 = sadd.s32 1, %s37
          $region30: #{reverse.1} parent=23 // loop_footer_branch
            %36 = sbr.rel target = $region26
          $region31: #{reverse.1} parent=23 // loop_exit
            _
        $region24: #{reverse.1} parent=8 // pred_fallthru
          _
        // Predicated region
        $region32: #{reverse.1} parent=8 // pred_check
          _
        $region33: #{reverse.1} parent=8 // pred_check_branch
          %61 = sbr.rel target = $region35
        $region34: #{reverse.1} parent=8 // pred_region
          _
        $region35: #{reverse.1} parent=8 // pred_fallthru
          _
      $region9: #{reverse.1} parent=4 // pred_fallthru
        _
      // Predicated region
      $region10: #{reverse.1} parent=4 // pred_check
        _
      $region11: #{reverse.1} parent=4 // pred_check_branch
        %8 = sbr.rel target = $region13
      $region12: #{reverse.1} parent=4 // pred_region
        loop: start=0, step=1, limit=1
        $region14: #{reverse.1} parent=12 // loop_pre_header
          _
        $region15: #{reverse.1} parent=12 // loop_header
          %s11 = sphi 0, %s15
          %p12 = scmp.ge.s32.totalorder %s11, 1
          %s16 = sphi %s0, %s0
          %s17 = sphi %s2, %s2
        $region16: #{reverse.1} parent=12 // loop_header_branch
          %14 = sbr.rel (%p12) target = $region20
        $region17: #{reverse.1} parent=12 // loop_body
          %v18 = vld [vmem:[%s16] sm:$0xff]
          %19 = vst [vmem:[%s17] sm:$0xff] %v18
          %v20 = vld [vmem:[%s16 + $0x8] sm:$0xff]
          %21 = vst [vmem:[%s17 + $0x10] sm:$0xff] %v20
          %v22 = vld [vmem:[%s16 + $0x10] sm:$0xff]
          %23 = vst [vmem:[%s17 + $0x20] sm:$0xff] %v22
          %v24 = vld [vmem:[%s16 + $0x18] sm:$0xff]
          %25 = vst [vmem:[%s17 + $0x30] sm:$0xff] %v24
          %v26 = vld [vmem:[%s16 + $0x20] sm:$0xff]
          %27 = vst [vmem:[%s17 + $0x40] sm:$0xff] %v26
          %v28 = vld [vmem:[%s16 + $0x28] sm:$0xff]
          %29 = vst [vmem:[%s17 + $0x50] sm:$0xff] %v28
          %v30 = vld [vmem:[%s16 + $0x30] sm:$0xff]
          %31 = vst [vmem:[%s17 + $0x60] sm:$0xff] %v30
          %v32 = vld [vmem:[%s16 + $0x38] sm:$0xff]
          %33 = vst [vmem:[%s17 + $0x70] sm:$0xff] %v32
        $region18: #{reverse.1} parent=12 // loop_footer
          %s15 = sadd.s32 1, %s11
        $region19: #{reverse.1} parent=12 // loop_footer_branch
          %10 = sbr.rel target = $region15
        $region20: #{reverse.1} parent=12 // loop_exit
          _
      $region13: #{reverse.1} parent=4 // pred_fallthru
        _
    $region5: #{reverse.1} parent=1 // pred_fallthru
      _
    %62 = vnop
    %s63 = scalar_lea.vmem [#allocation0], 7
    %v64 = vld [vmem:[%s63] ss:$-1 sm:$0xff]
    %v65 = vrot.slane %v64, 1
    %66 = vst [vmem:[#allocation1] sm:$0xff] %v65
    %s67 = scalar_lea.vmem [#allocation0], 8
    %s68 = scalar_lea.vmem %s67, 7 [#allocation0]
    %v69 = vld [vmem:[%s68] ss:$-1 sm:$0xff]
    %v70 = vrot.slane %v69, 1
    %v71 = vlaneseq
    %v72 = vshrl.u32 %v71, 7
    %vm73 = vcmp.lt.s32.totalorder %v72, 7
    %74 = vst.msk [vmem:[#allocation1] sm:$0xff] %vm73, %v70
    %s75 = scalar_lea.vmem [#allocation1], 8
    %s76 = scalar_lea.vmem [#allocation0], 16
    %s77 = scalar_lea.vmem %s76, 7 [#allocation0]
    %v78 = vld [vmem:[%s77] ss:$-1 sm:$0xff]
    %v79 = vrot.slane %v78, 1
    %80 = vst [vmem:[%s75] sm:$0xff] %v79
    %s81 = scalar_lea.vmem %s76, 8 [#allocation0]
    %s82 = scalar_lea.vmem %s81, 7 [#allocation0]
    %v83 = vld [vmem:[%s82] ss:$-1 sm:$0xff]
    %v84 = vrot.slane %v83, 1
    %v85 = vlaneseq
    %v86 = vshrl.u32 %v85, 7
    %vm87 = vcmp.lt.s32.totalorder %v86, 7
    %88 = vst.msk [vmem:[%s75] sm:$0xff] %vm87, %v84
    %s89 = scalar_lea.vmem [#allocation1], 16
    %s90 = scalar_lea.vmem [#allocation0], 32
    %s91 = scalar_lea.vmem %s90, 7 [#allocation0]
    %v92 = vld [vmem:[%s91] ss:$-1 sm:$0xff]
    %v93 = vrot.slane %v92, 1
    %94 = vst [vmem:[%s89] sm:$0xff] %v93
    %s95 = scalar_lea.vmem %s90, 8 [#allocation0]
    %s96 = scalar_lea.vmem %s95, 7 [#allocation0]
    %v97 = vld [vmem:[%s96] ss:$-1 sm:$0xff]
    %v98 = vrot.slane %v97, 1
    %v99 = vlaneseq
    %v100 = vshrl.u32 %v99, 7
    %vm101 = vcmp.lt.s32.totalorder %v100, 7
    %102 = vst.msk [vmem:[%s89] sm:$0xff] %vm101, %v98
    %s103 = scalar_lea.vmem [#allocation1], 24
    %s104 = scalar_lea.vmem [#allocation0], 48
    %s105 = scalar_lea.vmem %s104, 7 [#allocation0]
    %v106 = vld [vmem:[%s105] ss:$-1 sm:$0xff]
    %v107 = vrot.slane %v106, 1
    %108 = vst [vmem:[%s103] sm:$0xff] %v107
    %s109 = scalar_lea.vmem %s104, 8 [#allocation0]
    %s110 = scalar_lea.vmem %s109, 7 [#allocation0]
    %v111 = vld [vmem:[%s110] ss:$-1 sm:$0xff]
    %v112 = vrot.slane %v111, 1
    %v113 = vlaneseq
    %v114 = vshrl.u32 %v113, 7
    %vm115 = vcmp.lt.s32.totalorder %v114, 7
    %116 = vst.msk [vmem:[%s103] sm:$0xff] %vm115, %v112
    %s117 = scalar_lea.vmem [#allocation1], 32
    %s118 = scalar_lea.vmem [#allocation0], 64
    %s119 = scalar_lea.vmem %s118, 7 [#allocation0]
    %v120 = vld [vmem:[%s119] ss:$-1 sm:$0xff]
    %v121 = vrot.slane %v120, 1
    %122 = vst [vmem:[%s117] sm:$0xff] %v121
    %s123 = scalar_lea.vmem %s118, 8 [#allocation0]
    %s124 = scalar_lea.vmem %s123, 7 [#allocation0]
    %v125 = vld [vmem:[%s124] ss:$-1 sm:$0xff]
    %v126 = vrot.slane %v125, 1
    %v127 = vlaneseq
    %v128 = vshrl.u32 %v127, 7
    %vm129 = vcmp.lt.s32.totalorder %v128, 7
    %130 = vst.msk [vmem:[%s117] sm:$0xff] %vm129, %v126
    %s131 = scalar_lea.vmem [#allocation1], 40
    %s132 = scalar_lea.vmem [#allocation0], 80
    %s133 = scalar_lea.vmem %s132, 7 [#allocation0]
    %v134 = vld [vmem:[%s133] ss:$-1 sm:$0xff]
    %v135 = vrot.slane %v134, 1
    %136 = vst [vmem:[%s131] sm:$0xff] %v135
    %s137 = scalar_lea.vmem %s132, 8 [#allocation0]
    %s138 = scalar_lea.vmem %s137, 7 [#allocation0]
    %v139 = vld [vmem:[%s138] ss:$-1 sm:$0xff]
    %v140 = vrot.slane %v139, 1
    %v141 = vlaneseq
    %v142 = vshrl.u32 %v141, 7
    %vm143 = vcmp.lt.s32.totalorder %v142, 7
    %144 = vst.msk [vmem:[%s131] sm:$0xff] %vm143, %v140
    %s145 = scalar_lea.vmem [#allocation1], 48
    %s146 = scalar_lea.vmem [#allocation0], 96
    %s147 = scalar_lea.vmem %s146, 7 [#allocation0]
    %v148 = vld [vmem:[%s147] ss:$-1 sm:$0xff]
    %v149 = vrot.slane %v148, 1
    %150 = vst [vmem:[%s145] sm:$0xff] %v149
    %s151 = scalar_lea.vmem %s146, 8 [#allocation0]
    %s152 = scalar_lea.vmem %s151, 7 [#allocation0]
    %v153 = vld [vmem:[%s152] ss:$-1 sm:$0xff]
    %v154 = vrot.slane %v153, 1
    %v155 = vlaneseq
    %v156 = vshrl.u32 %v155, 7
    %vm157 = vcmp.lt.s32.totalorder %v156, 7
    %158 = vst.msk [vmem:[%s145] sm:$0xff] %vm157, %v154
    %s159 = scalar_lea.vmem [#allocation1], 56
    %s160 = scalar_lea.vmem [#allocation0], 112
    %s161 = scalar_lea.vmem %s160, 7 [#allocation0]
    %v162 = vld [vmem:[%s161] ss:$-1 sm:$0xff]
    %v163 = vrot.slane %v162, 1
    %164 = vst [vmem:[%s159] sm:$0xff] %v163
    %s165 = scalar_lea.vmem %s160, 8 [#allocation0]
    %s166 = scalar_lea.vmem %s165, 7 [#allocation0]
    %v167 = vld [vmem:[%s166] ss:$-1 sm:$0xff]
    %v168 = vrot.slane %v167, 1
    %v169 = vlaneseq
    %v170 = vshrl.u32 %v169, 7
    %vm171 = vcmp.lt.s32.totalorder %v170, 7
    %172 = vst.msk [vmem:[%s159] sm:$0xff] %vm171, %v168
    // Predicated region
    $region36: #{reverse.1} parent=1 // pred_check
      _
    $region37: #{reverse.1} parent=1 // pred_check_branch
      %174 = sbr.rel (0) target = $region39
    $region38: #{reverse.1} parent=1 // pred_region
      // Predicated region
      $region40: #{reverse.1} parent=38 // pred_check
        _
      $region41: #{reverse.1} parent=38 // pred_check_branch
        %176 = sbr.rel (0) target = $region43
      $region42: #{reverse.1} parent=38 // pred_region
        // Predicated region
        $region55: #{reverse.1} parent=42 // pred_check
          _
        $region56: #{reverse.1} parent=42 // pred_check_branch
          %205 = sbr.rel (0) target = $region58
        $region57: #{reverse.1} parent=42 // pred_region
          loop: start=0, step=1, limit=1
          $region59: #{reverse.1} parent=57 // loop_pre_header
            _
          $region60: #{reverse.1} parent=57 // loop_header
            %s207 = sphi 0, %s211
            %p208 = scmp.ge.s32.totalorder %s207, 1
            %s212 = sphi [#allocation1], [#allocation1]
            %s213 = sphi %s1, %s1
          $region61: #{reverse.1} parent=57 // loop_header_branch
            %210 = sbr.rel (%p208) target = $region65
          $region62: #{reverse.1} parent=57 // loop_body
            %v214 = vld [vmem:[%s212] sm:$0xff]
            %215 = vst [vmem:[%s213] sm:$0xff] %v214
            %v216 = vld [vmem:[%s212 + $0x8] sm:$0xff]
            %217 = vst [vmem:[%s213 + $0x8] sm:$0xff] %v216
            %v218 = vld [vmem:[%s212 + $0x10] sm:$0xff]
            %219 = vst [vmem:[%s213 + $0x10] sm:$0xff] %v218
            %v220 = vld [vmem:[%s212 + $0x18] sm:$0xff]
            %221 = vst [vmem:[%s213 + $0x18] sm:$0xff] %v220
            %v222 = vld [vmem:[%s212 + $0x20] sm:$0xff]
            %223 = vst [vmem:[%s213 + $0x20] sm:$0xff] %v222
            %v224 = vld [vmem:[%s212 + $0x28] sm:$0xff]
            %225 = vst [vmem:[%s213 + $0x28] sm:$0xff] %v224
            %v226 = vld [vmem:[%s212 + $0x30] sm:$0xff]
            %227 = vst [vmem:[%s213 + $0x30] sm:$0xff] %v226
            %v228 = vld [vmem:[%s212 + $0x38] sm:$0xff]
            %229 = vst [vmem:[%s213 + $0x38] sm:$0xff] %v228
          $region63: #{reverse.1} parent=57 // loop_footer
            %s211 = sadd.s32 1, %s207
          $region64: #{reverse.1} parent=57 // loop_footer_branch
            %206 = sbr.rel target = $region60
          $region65: #{reverse.1} parent=57 // loop_exit
            _
        $region58: #{reverse.1} parent=42 // pred_fallthru
          _
        // Predicated region
        $region66: #{reverse.1} parent=42 // pred_check
          _
        $region67: #{reverse.1} parent=42 // pred_check_branch
          %231 = sbr.rel target = $region69
        $region68: #{reverse.1} parent=42 // pred_region
          _
        $region69: #{reverse.1} parent=42 // pred_fallthru
          _
      $region43: #{reverse.1} parent=38 // pred_fallthru
        _
      // Predicated region
      $region44: #{reverse.1} parent=38 // pred_check
        _
      $region45: #{reverse.1} parent=38 // pred_check_branch
        %178 = sbr.rel target = $region47
      $region46: #{reverse.1} parent=38 // pred_region
        loop: start=0, step=1, limit=1
        $region48: #{reverse.1} parent=46 // loop_pre_header
          _
        $region49: #{reverse.1} parent=46 // loop_header
          %s181 = sphi 0, %s185
          %p182 = scmp.ge.s32.totalorder %s181, 1
          %s186 = sphi [#allocation1], [#allocation1]
          %s187 = sphi %s1, %s1
        $region50: #{reverse.1} parent=46 // loop_header_branch
          %184 = sbr.rel (%p182) target = $region54
        $region51: #{reverse.1} parent=46 // loop_body
          %v188 = vld [vmem:[%s186] sm:$0xff]
          %189 = vst [vmem:[%s187] sm:$0xff] %v188
          %v190 = vld [vmem:[%s186 + $0x8] sm:$0xff]
          %191 = vst [vmem:[%s187 + $0x8] sm:$0xff] %v190
          %v192 = vld [vmem:[%s186 + $0x10] sm:$0xff]
          %193 = vst [vmem:[%s187 + $0x10] sm:$0xff] %v192
          %v194 = vld [vmem:[%s186 + $0x18] sm:$0xff]
          %195 = vst [vmem:[%s187 + $0x18] sm:$0xff] %v194
          %v196 = vld [vmem:[%s186 + $0x20] sm:$0xff]
          %197 = vst [vmem:[%s187 + $0x20] sm:$0xff] %v196
          %v198 = vld [vmem:[%s186 + $0x28] sm:$0xff]
          %199 = vst [vmem:[%s187 + $0x28] sm:$0xff] %v198
          %v200 = vld [vmem:[%s186 + $0x30] sm:$0xff]
          %201 = vst [vmem:[%s187 + $0x30] sm:$0xff] %v200
          %v202 = vld [vmem:[%s186 + $0x38] sm:$0xff]
          %203 = vst [vmem:[%s187 + $0x38] sm:$0xff] %v202
        $region52: #{reverse.1} parent=46 // loop_footer
          %s185 = sadd.s32 1, %s181
        $region53: #{reverse.1} parent=46 // loop_footer_branch
          %180 = sbr.rel target = $region49
        $region54: #{reverse.1} parent=46 // loop_exit
          _
      $region47: #{reverse.1} parent=38 // pred_fallthru
        _
    $region39: #{reverse.1} parent=1 // pred_fallthru
      _
    %232 = vnop

// kernel: _spectral_conv_forward.1
$region0: #{_spectral_conv_forward.1}
  #allocation0 [shape = 'u32[]', space=smem, size = 0x4, offset = 0x4, fixed_abs, tag = 'smem constant byte address 0x4 - core index']
  #allocation1 [shape = 'u32[144,128]{1,0:T(1,128)}', space=vmem, size = 0x12000, scoped, tag = 'internal scratch']
  %s0 = inlined_call_operand.vmem [shape: f32[2,8,256], index: 0, kind: input, shape index: {}]
  %s1 = inlined_call_operand.vmem [shape: f32[2,8,256], index: 1, kind: input, shape index: {}]
  %s2 = inlined_call_operand.vmem [shape: f32[8,8,256], index: 2, kind: input, shape index: {}]
  %s3 = inlined_call_operand.vmem [shape: f32[8,8,256], index: 3, kind: input, shape index: {}]
  %s4 = inlined_call_operand.vmem [shape: f32[2,8,256], index: 4, kind: output, shape index: {0}]
  %s5 = inlined_call_operand.vmem [shape: f32[2,8,256], index: 5, kind: output, shape index: {1}]
  %6 = xla_tuple %s4, %s5
  %s7 = sld [smem:[#allocation0]]
  $region141: #{_spectral_conv_forward.1} parent=0
    _
  %s9 = ssub.s32 1, %s7
  %s10 = scalar_select 0, %s9, %s7
  $region1: #{_spectral_conv_forward.1} parent=0
    #allocation2 [shape = 'u8[65536]{0}', space=vmem, size = 0x10000, scoped, tag = 'input window, operand 2']
    #allocation3 [shape = 'u8[65536]{0}', space=vmem, size = 0x10000, scoped, tag = 'input window, operand 3']
    loop: start=0, step=1, limit=6
    $region2: #{_spectral_conv_forward.1} parent=1 // loop_pre_header
      _
    $region3: #{_spectral_conv_forward.1} parent=1 // loop_header
      %s12 = sphi 0, %s16
      %p13 = scmp.ge.s32.totalorder %s12, 6
      %s19 = sphi 0, %s45
      %s20 = sphi 0, %s41
      %s21 = sphi 0, %s37
      %s22 = sphi 0, %s33
      %s23 = sphi 0, %s19
      %s24 = sphi 0, %s20
      %s25 = sphi 0, %s21
      %s26 = sphi 0, %s22
      %s27 = sphi 0, %s23
      %s28 = sphi 0, %s24
      %s29 = sphi 0, %s25
      %s30 = sphi 0, %s26
      %s52 = sphi 0, %s54
      %s55 = sphi 0, %s52
      %s56 = sphi 0, %s55
      %s72 = sphi 0, %s56
      %s82 = sphi 0, %s84
      %s85 = sphi 0, %s82
      %s86 = sphi 0, %s85
      %s102 = sphi 0, %s86
      %s112 = sphi 0, %s114
      %s115 = sphi 0, %s112
      %s116 = sphi 0, %s115
      %s132 = sphi 0, %s116
      %s142 = sphi 0, %s144
      %s145 = sphi 0, %s142
      %s146 = sphi 0, %s145
      %s162 = sphi 0, %s146
      %s172 = sphi 0, %s174
      %s175 = sphi 0, %s172
      %s176 = sphi 0, %s175
      %s192 = sphi 0, %s176
      %s202 = sphi 0, %s204
      %s205 = sphi 0, %s202
      %s206 = sphi 0, %s205
      %s222 = sphi 0, %s206
    $region4: #{_spectral_conv_forward.1} parent=1 // loop_header_branch
      %15 = sbr.rel (%p13) target = $region8
    $region5: #{_spectral_conv_forward.1} parent=1 // loop_body
      %s17 = ssub.s32 %s12, 1
      %s18 = ssub.s32 %s12, 2
      %s31 = sadd.s32 1, %s22
      %p32 = scmp.ge.s32.totalorder %s31, 1
      %s33 = scalar_select %p32, 0, %s31
      %s34 = sadd.s32 1, %s21
      %s35 = scalar_select %p32, %s34, %s21
      %p36 = scmp.ge.s32.totalorder %s35, 2
      %s37 = scalar_select %p36, 0, %s35
      %s38 = sadd.s32 1, %s20
      %s39 = scalar_select %p36, %s38, %s20
      %p40 = scmp.ge.s32.totalorder %s39, 2
      %s41 = scalar_select %p40, 0, %s39
      %s42 = sadd.s32 1, %s19
      %s43 = scalar_select %p40, %s42, %s19
      %p44 = scmp.ge.s32.totalorder %s43, 1
      %s45 = scalar_select %p44, 0, %s43
      %s46 = ssub.s32 %s21, %s37
      %s47 = ssub.s32 %s22, %s33
      %s48 = sor.u32 %s46, %s47
      %s49 = ssub.s32 %s20, %s41
      %s50 = sor.u32 %s48, %s49
      %p51 = scmp.eq.s32.totalorder %s50, 0
      %s53 = sadd.s32 %s52, 1
      %s54 = scalar_select %p51, %s52, %s53
      %p57 = pneg %p51
      %p58 = scmp.eq.s32.totalorder %s12, 3
      %p59 = por %p57, %p58
      %p60 = scmp.ne.s32.totalorder %s52, %s55
      %p61 = scmp.eq.s32.totalorder %s12, 0
      %p62 = por %p60, %p61
      %p63 = scmp.ne.s32.totalorder %s52, %s55
      %p64 = scmp.eq.s32.totalorder %s17, 3
      %p65 = por %p63, %p64
      %p66 = scmp.ne.s32.totalorder %s55, %s56
      %p67 = scmp.eq.s32.totalorder %s17, 0
      %p68 = por %p66, %p67
      %p69 = scmp.ne.s32.totalorder %s55, %s56
      %p70 = scmp.eq.s32.totalorder %s18, 3
      %p71 = por %p69, %p70
      %p73 = scmp.ne.s32.totalorder %s56, %s72
      %p74 = scmp.eq.s32.totalorder %s18, 0
      %p75 = por %p73, %p74
      %s76 = ssub.s32 %s21, %s37
      %s77 = ssub.s32 %s22, %s33
      %s78 = sor.u32 %s76, %s77
      %s79 = ssub.s32 %s20, %s41
      %s80 = sor.u32 %s78, %s79
      %p81 = scmp.eq.s32.totalorder %s80, 0
      %s83 = sadd.s32 %s82, 1
      %s84 = scalar_select %p81, %s82, %s83
      %p87 = pneg %p81
      %p88 = scmp.eq.s32.totalorder %s12, 3
      %p89 = por %p87, %p88
      %p90 = scmp.ne.s32.totalorder %s82, %s85
      %p91 = scmp.eq.s32.totalorder %s12, 0
      %p92 = por %p90, %p91
      %p93 = scmp.ne.s32.totalorder %s82, %s85
      %p94 = scmp.eq.s32.totalorder %s17, 3
      %p95 = por %p93, %p94
      %p96 = scmp.ne.s32.totalorder %s85, %s86
      %p97 = scmp.eq.s32.totalorder %s17, 0
      %p98 = por %p96, %p97
      %p99 = scmp.ne.s32.totalorder %s85, %s86
      %p100 = scmp.eq.s32.totalorder %s18, 3
      %p101 = por %p99, %p100
      %p103 = scmp.ne.s32.totalorder %s86, %s102
      %p104 = scmp.eq.s32.totalorder %s18, 0
      %p105 = por %p103, %p104
      %s106 = ssub.s32 %s22, %s33
      %s107 = ssub.s32 %s19, %s45
      %s108 = sor.u32 %s106, %s107
      %s109 = ssub.s32 %s20, %s41
      %s110 = sor.u32 %s108, %s109
      %p111 = scmp.eq.s32.totalorder %s110, 0
      %s113 = sadd.s32 %s112, 1
      %s114 = scalar_select %p111, %s112, %s113
      %p117 = pneg %p111
      %p118 = scmp.eq.s32.totalorder %s12, 3
      %p119 = por %p117, %p118
      %p120 = scmp.ne.s32.totalorder %s112, %s115
      %p121 = scmp.eq.s32.totalorder %s12, 0
      %p122 = por %p120, %p121
      %p123 = scmp.ne.s32.totalorder %s112, %s115
      %p124 = scmp.eq.s32.totalorder %s17, 3
      %p125 = por %p123, %p124
      %p126 = scmp.ne.s32.totalorder %s115, %s116
      %p127 = scmp.eq.s32.totalorder %s17, 0
      %p128 = por %p126, %p127
      %p129 = scmp.ne.s32.totalorder %s115, %s116
      %p130 = scmp.eq.s32.totalorder %s18, 3
      %p131 = por %p129, %p130
      %p133 = scmp.ne.s32.totalorder %s116, %s132
      %p134 = scmp.eq.s32.totalorder %s18, 0
      %p135 = por %p133, %p134
      %s136 = ssub.s32 %s22, %s33
      %s137 = ssub.s32 %s19, %s45
      %s138 = sor.u32 %s136, %s137
      %s139 = ssub.s32 %s20, %s41
      %s140 = sor.u32 %s138, %s139
      %p141 = scmp.eq.s32.totalorder %s140, 0
      %s143 = sadd.s32 %s142, 1
      %s144 = scalar_select %p141, %s142, %s143
      %p147 = pneg %p141
      %p148 = scmp.eq.s32.totalorder %s12, 3
      %p149 = por %p147, %p148
      %p150 = scmp.ne.s32.totalorder %s142, %s145
      %p151 = scmp.eq.s32.totalorder %s12, 0
      %p152 = por %p150, %p151
      %p153 = scmp.ne.s32.totalorder %s142, %s145
      %p154 = scmp.eq.s32.totalorder %s17, 3
      %p155 = por %p153, %p154
      %p156 = scmp.ne.s32.totalorder %s145, %s146
      %p157 = scmp.eq.s32.totalorder %s17, 0
      %p158 = por %p156, %p157
      %p159 = scmp.ne.s32.totalorder %s145, %s146
      %p160 = scmp.eq.s32.totalorder %s18, 3
      %p161 = por %p159, %p160
      %p163 = scmp.ne.s32.totalorder %s146, %s162
      %p164 = scmp.eq.s32.totalorder %s18, 0
      %p165 = por %p163, %p164
      %s166 = ssub.s32 %s21, %s37
      %s167 = ssub.s32 %s19, %s45
      %s168 = sor.u32 %s166, %s167
      %s169 = ssub.s32 %s20, %s41
      %s170 = sor.u32 %s168, %s169
      %p171 = scmp.eq.s32.totalorder %s170, 0
      %s173 = sadd.s32 %s172, 1
      %s174 = scalar_select %p171, %s172, %s173
      %p177 = pneg %p171
      %p178 = scmp.eq.s32.totalorder %s12, 3
      %p179 = por %p177, %p178
      %p180 = scmp.ne.s32.totalorder %s172, %s175
      %p181 = scmp.eq.s32.totalorder %s12, 0
      %p182 = por %p180, %p181
      %p183 = scmp.ne.s32.totalorder %s172, %s175
      %p184 = scmp.eq.s32.totalorder %s17, 3
      %p185 = por %p183, %p184
      %p186 = scmp.ne.s32.totalorder %s175, %s176
      %p187 = scmp.eq.s32.totalorder %s17, 0
      %p188 = por %p186, %p187
      %p189 = scmp.ne.s32.totalorder %s175, %s176
      %p190 = scmp.eq.s32.totalorder %s18, 3
      %p191 = por %p189, %p190
      %p193 = scmp.ne.s32.totalorder %s176, %s192
      %p194 = scmp.eq.s32.totalorder %s18, 0
      %p195 = por %p193, %p194
      %s196 = ssub.s32 %s21, %s37
      %s197 = ssub.s32 %s19, %s45
      %s198 = sor.u32 %s196, %s197
      %s199 = ssub.s32 %s20, %s41
      %s200 = sor.u32 %s198, %s199
      %p201 = scmp.eq.s32.totalorder %s200, 0
      %s203 = sadd.s32 %s202, 1
      %s204 = scalar_select %p201, %s202, %s203
      %p207 = pneg %p201
      %p208 = scmp.eq.s32.totalorder %s12, 3
      %p209 = por %p207, %p208
      %p210 = scmp.ne.s32.totalorder %s202, %s205
      %p211 = scmp.eq.s32.totalorder %s12, 0
      %p212 = por %p210, %p211
      %p213 = scmp.ne.s32.totalorder %s202, %s205
      %p214 = scmp.eq.s32.totalorder %s17, 3
      %p215 = por %p213, %p214
      %p216 = scmp.ne.s32.totalorder %s205, %s206
      %p217 = scmp.eq.s32.totalorder %s17, 0
      %p218 = por %p216, %p217
      %p219 = scmp.ne.s32.totalorder %s205, %s206
      %p220 = scmp.eq.s32.totalorder %s18, 3
      %p221 = por %p219, %p220
      %p223 = scmp.ne.s32.totalorder %s206, %s222
      %p224 = scmp.eq.s32.totalorder %s18, 0
      %p225 = por %p223, %p224
      %p226 = scmp.le.s32.totalorder 1, %s12
      %p227 = scmp.lt.s32.totalorder %s12, 5
      %p228 = pnand %p226, %p227
      %p229 = pneg %p228
      // Predicated region
      $region9: #{_spectral_conv_forward.1} parent=5 // pred_check
        _
      $region10: #{_spectral_conv_forward.1} parent=5 // pred_check_branch
        %231 = sbr.rel (%p228) target = $region12
      $region11: #{_spectral_conv_forward.1} parent=5 // pred_region
        %s232 = ssub.s32 %s12, 1
      $region12: #{_spectral_conv_forward.1} parent=5 // pred_fallthru
        _
      %p233 = scmp.lt.s32.totalorder %s12, 4
      // Predicated region
      $region13: #{_spectral_conv_forward.1} parent=5 // pred_check
        %p234 = pneg %p233
      $region14: #{_spectral_conv_forward.1} parent=5 // pred_check_branch
        %236 = sbr.rel (%p234) target = $region16
      $region15: #{_spectral_conv_forward.1} parent=5 // pred_region
        // Predicated region
        $region17: #{_spectral_conv_forward.1} parent=15 // pred_check
          %p237 = pneg %p62
        $region18: #{_spectral_conv_forward.1} parent=15 // pred_check_branch
          %239 = sbr.rel (%p237) target = $region20
        $region19: #{_spectral_conv_forward.1} parent=15 // pred_region
          %p240 = scmp.lt.s32.totalorder %s21, 1
          %s241 = scalar_select %p240, %s21, 1
          %p242 = scmp.lt.s32.totalorder %s22, 0
          %s243 = scalar_select %p242, %s22, 0
          %p244 = scmp.lt.s32.totalorder %s20, 1
          %s245 = scalar_select %p244, %s20, 1
          %s246 = smul.addr %s243, 2
          %s247 = sadd.s32 %s245, %s246
          %s248 = smul.addr %s241, 2
          %s249 = sadd.s32 %s247, %s248
          %s250 = smul.addr %s249, 8
          %s251 = scalar_lea.vmem %s0, %s250
        $region20: #{_spectral_conv_forward.1} parent=15 // pred_fallthru
          _
        // Predicated region
        $region21: #{_spectral_conv_forward.1} parent=15 // pred_check
          %p252 = pneg %p92
        $region22: #{_spectral_conv_forward.1} parent=15 // pred_check_branch
          %254 = sbr.rel (%p252) target = $region24
        $region23: #{_spectral_conv_forward.1} parent=15 // pred_region
          %p255 = scmp.lt.s32.totalorder %s21, 1
          %s256 = scalar_select %p255, %s21, 1
          %p257 = scmp.lt.s32.totalorder %s22, 0
          %s258 = scalar_select %p257, %s22, 0
          %p259 = scmp.lt.s32.totalorder %s20, 1
          %s260 = scalar_select %p259, %s20, 1
          %s261 = smul.addr %s258, 2
          %s262 = sadd.s32 %s260, %s261
          %s263 = smul.addr %s256, 2
          %s264 = sadd.s32 %s262, %s263
          %s265 = smul.addr %s264, 8
          %s266 = scalar_lea.vmem %s1, %s265
        $region24: #{_spectral_conv_forward.1} parent=15 // pred_fallthru
          _
        // Predicated region
        $region25: #{_spectral_conv_forward.1} parent=15 // pred_check
          %p267 = pneg %p122
        $region26: #{_spectral_conv_forward.1} parent=15 // pred_check_branch
          %269 = sbr.rel (%p267) target = $region28
        $region27: #{_spectral_conv_forward.1} parent=15 // pred_region
          %s270 = sand.u32 %s112, 1
          %s271 = sand.u32 %s112, 1
          %s272 = smul.addr %s271, 64
          %s273 = scalar_lea.vmem [#allocation2], %s272
          %s274 = smul.u32 8, %s22
          %s275 = smul.addr %s19, 2
          %s276 = sadd.s32 %s20, %s275
          %s277 = smul.addr %s274, 2
          %s278 = sadd.s32 %s276, %s277
          %s279 = smul.addr %s278, 8
          %s280 = scalar_lea.vmem %s2, %s279
          // Predicated region
          $region29: #{_spectral_conv_forward.1} parent=27 // pred_check
            _
          $region30: #{_spectral_conv_forward.1} parent=27 // pred_check_branch
            %282 = sbr.rel (0) target = $region32
          $region31: #{_spectral_conv_forward.1} parent=27 // pred_region
            // Predicated region
            $region33: #{_spectral_conv_forward.1} parent=31 // pred_check
              _
            $region34: #{_spectral_conv_forward.1} parent=31 // pred_check_branch
              %284 = sbr.rel (0) target = $region36
            $region35: #{_spectral_conv_forward.1} parent=31 // pred_region
              // Predicated region
              $region48: #{_spectral_conv_forward.1} parent=35 // pred_check
                _
              $region49: #{_spectral_conv_forward.1} parent=35 // pred_check_branch
                %313 = sbr.rel (0) target = $region51
              $region50: #{_spectral_conv_forward.1} parent=35 // pred_region
                loop: start=0, step=1, limit=1
                $region52: #{_spectral_conv_forward.1} parent=50 // loop_pre_header
                  _
                $region53: #{_spectral_conv_forward.1} parent=50 // loop_header
                  %s315 = sphi 0, %s319
                  %p316 = scmp.ge.s32.totalorder %s315, 1
                  %s320 = sphi %s280, %s280
                  %s321 = sphi %s273, %s273
                $region54: #{_spectral_conv_forward.1} parent=50 // loop_header_branch
                  %318 = sbr.rel (%p316) target = $region58
                $region55: #{_spectral_conv_forward.1} parent=50 // loop_body
                  %v322 = vld [vmem:[%s320] sm:$0xff]
                  %323 = vst [vmem:[%s321] sm:$0xff] %v322
                  %v324 = vld [vmem:[%s320 + $0x10] sm:$0xff]
                  %325 = vst [vmem:[%s321 + $0x8] sm:$0xff] %v324
                  %v326 = vld [vmem:[%s320 + $0x20] sm:$0xff]
                  %327 = vst [vmem:[%s321 + $0x10] sm:$0xff] %v326
                  %v328 = vld [vmem:[%s320 + $0x30] sm:$0xff]
                  %329 = vst [vmem:[%s321 + $0x18] sm:$0xff] %v328
                  %v330 = vld [vmem:[%s320 + $0x40] sm:$0xff]
                  %331 = vst [vmem:[%s321 + $0x20] sm:$0xff] %v330
                  %v332 = vld [vmem:[%s320 + $0x50] sm:$0xff]
                  %333 = vst [vmem:[%s321 + $0x28] sm:$0xff] %v332
                  %v334 = vld [vmem:[%s320 + $0x60] sm:$0xff]
                  %335 = vst [vmem:[%s321 + $0x30] sm:$0xff] %v334
                  %v336 = vld [vmem:[%s320 + $0x70] sm:$0xff]
                  %337 = vst [vmem:[%s321 + $0x38] sm:$0xff] %v336
                $region56: #{_spectral_conv_forward.1} parent=50 // loop_footer
                  %s319 = sadd.s32 1, %s315
                $region57: #{_spectral_conv_forward.1} parent=50 // loop_footer_branch
                  %314 = sbr.rel target = $region53
                $region58: #{_spectral_conv_forward.1} parent=50 // loop_exit
                  _
              $region51: #{_spectral_conv_forward.1} parent=35 // pred_fallthru
                _
              // Predicated region
              $region59: #{_spectral_conv_forward.1} parent=35 // pred_check
                _
              $region60: #{_spectral_conv_forward.1} parent=35 // pred_check_branch
                %339 = sbr.rel target = $region62
              $region61: #{_spectral_conv_forward.1} parent=35 // pred_region
                _
              $region62: #{_spectral_conv_forward.1} parent=35 // pred_fallthru
                _
            $region36: #{_spectral_conv_forward.1} parent=31 // pred_fallthru
              _
            // Predicated region
            $region37: #{_spectral_conv_forward.1} parent=31 // pred_check
              _
            $region38: #{_spectral_conv_forward.1} parent=31 // pred_check_branch
              %286 = sbr.rel target = $region40
            $region39: #{_spectral_conv_forward.1} parent=31 // pred_region
              loop: start=0, step=1, limit=1
              $region41: #{_spectral_conv_forward.1} parent=39 // loop_pre_header
                _
              $region42: #{_spectral_conv_forward.1} parent=39 // loop_header
                %s289 = sphi 0, %s293
                %p290 = scmp.ge.s32.totalorder %s289, 1
                %s294 = sphi %s280, %s280
                %s295 = sphi %s273, %s273
              $region43: #{_spectral_conv_forward.1} parent=39 // loop_header_branch
                %292 = sbr.rel (%p290) target = $region47
              $region44: #{_spectral_conv_forward.1} parent=39 // loop_body
                %v296 = vld [vmem:[%s294] sm:$0xff]
                %297 = vst [vmem:[%s295] sm:$0xff] %v296
                %v298 = vld [vmem:[%s294 + $0x10] sm:$0xff]
                %299 = vst [vmem:[%s295 + $0x8] sm:$0xff] %v298
                %v300 = vld [vmem:[%s294 + $0x20] sm:$0xff]
                %301 = vst [vmem:[%s295 + $0x10] sm:$0xff] %v300
                %v302 = vld [vmem:[%s294 + $0x30] sm:$0xff]
                %303 = vst [vmem:[%s295 + $0x18] sm:$0xff] %v302
                %v304 = vld [vmem:[%s294 + $0x40] sm:$0xff]
                %305 = vst [vmem:[%s295 + $0x20] sm:$0xff] %v304
                %v306 = vld [vmem:[%s294 + $0x50] sm:$0xff]
                %307 = vst [vmem:[%s295 + $0x28] sm:$0xff] %v306
                %v308 = vld [vmem:[%s294 + $0x60] sm:$0xff]
                %309 = vst [vmem:[%s295 + $0x30] sm:$0xff] %v308
                %v310 = vld [vmem:[%s294 + $0x70] sm:$0xff]
                %311 = vst [vmem:[%s295 + $0x38] sm:$0xff] %v310
              $region45: #{_spectral_conv_forward.1} parent=39 // loop_footer
                %s293 = sadd.s32 1, %s289
              $region46: #{_spectral_conv_forward.1} parent=39 // loop_footer_branch
                %288 = sbr.rel target = $region42
              $region47: #{_spectral_conv_forward.1} parent=39 // loop_exit
                _
            $region40: #{_spectral_conv_forward.1} parent=31 // pred_fallthru
              _
          $region32: #{_spectral_conv_forward.1} parent=27 // pred_fallthru
            _
          %340 = vnop
        $region28: #{_spectral_conv_forward.1} parent=15 // pred_fallthru
          _
        // Predicated region
        $region63: #{_spectral_conv_forward.1} parent=15 // pred_check
          %p341 = pneg %p152
        $region64: #{_spectral_conv_forward.1} parent=15 // pred_check_branch
          %343 = sbr.rel (%p341) target = $region66
        $region65: #{_spectral_conv_forward.1} parent=15 // pred_region
          %s344 = sand.u32 %s142, 1
          %s345 = sand.u32 %s142, 1
          %s346 = smul.addr %s345, 64
          %s347 = scalar_lea.vmem [#allocation3], %s346
          %s348 = smul.u32 8, %s22
          %s349 = smul.addr %s19, 2
          %s350 = sadd.s32 %s20, %s349
          %s351 = smul.addr %s348, 2
          %s352 = sadd.s32 %s350, %s351
          %s353 = smul.addr %s352, 8
          %s354 = scalar_lea.vmem %s3, %s353
          // Predicated region
          $region67: #{_spectral_conv_forward.1} parent=65 // pred_check
            _
          $region68: #{_spectral_conv_forward.1} parent=65 // pred_check_branch
            %356 = sbr.rel (0) target = $region70
          $region69: #{_spectral_conv_forward.1} parent=65 // pred_region
            // Predicated region
            $region71: #{_spectral_conv_forward.1} parent=69 // pred_check
              _
            $region72: #{_spectral_conv_forward.1} parent=69 // pred_check_branch
              %358 = sbr.rel (0) target = $region74
            $region73: #{_spectral_conv_forward.1} parent=69 // pred_region
              // Predicated region
              $region86: #{_spectral_conv_forward.1} parent=73 // pred_check
                _
              $region87: #{_spectral_conv_forward.1} parent=73 // pred_check_branch
                %387 = sbr.rel (0) target = $region89
              $region88: #{_spectral_conv_forward.1} parent=73 // pred_region
                loop: start=0, step=1, limit=1
                $region90: #{_spectral_conv_forward.1} parent=88 // loop_pre_header
                  _
                $region91: #{_spectral_conv_forward.1} parent=88 // loop_header
                  %s389 = sphi 0, %s393
                  %p390 = scmp.ge.s32.totalorder %s389, 1
                  %s394 = sphi %s354, %s354
                  %s395 = sphi %s347, %s347
                $region92: #{_spectral_conv_forward.1} parent=88 // loop_header_branch
                  %392 = sbr.rel (%p390) target = $region96
                $region93: #{_spectral_conv_forward.1} parent=88 // loop_body
                  %v396 = vld [vmem:[%s394] sm:$0xff]
                  %397 = vst [vmem:[%s395] sm:$0xff] %v396
                  %v398 = vld [vmem:[%s394 + $0x10] sm:$0xff]
                  %399 = vst [vmem:[%s395 + $0x8] sm:$0xff] %v398
                  %v400 = vld [vmem:[%s394 + $0x20] sm:$0xff]
                  %401 = vst [vmem:[%s395 + $0x10] sm:$0xff] %v400
                  %v402 = vld [vmem:[%s394 + $0x30] sm:$0xff]
                  %403 = vst [vmem:[%s395 + $0x18] sm:$0xff] %v402
                  %v404 = vld [vmem:[%s394 + $0x40] sm:$0xff]
                  %405 = vst [vmem:[%s395 + $0x20] sm:$0xff] %v404
                  %v406 = vld [vmem:[%s394 + $0x50] sm:$0xff]
                  %407 = vst [vmem:[%s395 + $0x28] sm:$0xff] %v406
                  %v408 = vld [vmem:[%s394 + $0x60] sm:$0xff]
                  %409 = vst [vmem:[%s395 + $0x30] sm:$0xff] %v408
                  %v410 = vld [vmem:[%s394 + $0x70] sm:$0xff]
                  %411 = vst [vmem:[%s395 + $0x38] sm:$0xff] %v410
                $region94: #{_spectral_conv_forward.1} parent=88 // loop_footer
                  %s393 = sadd.s32 1, %s389
                $region95: #{_spectral_conv_forward.1} parent=88 // loop_footer_branch
                  %388 = sbr.rel target = $region91
                $region96: #{_spectral_conv_forward.1} parent=88 // loop_exit
                  _
              $region89: #{_spectral_conv_forward.1} parent=73 // pred_fallthru
                _
              // Predicated region
              $region97: #{_spectral_conv_forward.1} parent=73 // pred_check
                _
              $region98: #{_spectral_conv_forward.1} parent=73 // pred_check_branch
                %413 = sbr.rel target = $region100
              $region99: #{_spectral_conv_forward.1} parent=73 // pred_region
                _
              $region100: #{_spectral_conv_forward.1} parent=73 // pred_fallthru
                _
            $region74: #{_spectral_conv_forward.1} parent=69 // pred_fallthru
              _
            // Predicated region
            $region75: #{_spectral_conv_forward.1} parent=69 // pred_check
              _
            $region76: #{_spectral_conv_forward.1} parent=69 // pred_check_branch
              %360 = sbr.rel target = $region78
            $region77: #{_spectral_conv_forward.1} parent=69 // pred_region
              loop: start=0, step=1, limit=1
              $region79: #{_spectral_conv_forward.1} parent=77 // loop_pre_header
                _
              $region80: #{_spectral_conv_forward.1} parent=77 // loop_header
                %s363 = sphi 0, %s367
                %p364 = scmp.ge.s32.totalorder %s363, 1
                %s368 = sphi %s354, %s354
                %s369 = sphi %s347, %s347
              $region81: #{_spectral_conv_forward.1} parent=77 // loop_header_branch
                %366 = sbr.rel (%p364) target = $region85
              $region82: #{_spectral_conv_forward.1} parent=77 // loop_body
                %v370 = vld [vmem:[%s368] sm:$0xff]
                %371 = vst [vmem:[%s369] sm:$0xff] %v370
                %v372 = vld [vmem:[%s368 + $0x10] sm:$0xff]
                %373 = vst [vmem:[%s369 + $0x8] sm:$0xff] %v372
                %v374 = vld [vmem:[%s368 + $0x20] sm:$0xff]
                %375 = vst [vmem:[%s369 + $0x10] sm:$0xff] %v374
                %v376 = vld [vmem:[%s368 + $0x30] sm:$0xff]
                %377 = vst [vmem:[%s369 + $0x18] sm:$0xff] %v376
                %v378 = vld [vmem:[%s368 + $0x40] sm:$0xff]
                %379 = vst [vmem:[%s369 + $0x20] sm:$0xff] %v378
                %v380 = vld [vmem:[%s368 + $0x50] sm:$0xff]
                %381 = vst [vmem:[%s369 + $0x28] sm:$0xff] %v380
                %v382 = vld [vmem:[%s368 + $0x60] sm:$0xff]
                %383 = vst [vmem:[%s369 + $0x30] sm:$0xff] %v382
                %v384 = vld [vmem:[%s368 + $0x70] sm:$0xff]
                %385 = vst [vmem:[%s369 + $0x38] sm:$0xff] %v384
              $region83: #{_spectral_conv_forward.1} parent=77 // loop_footer
                %s367 = sadd.s32 1, %s363
              $region84: #{_spectral_conv_forward.1} parent=77 // loop_footer_branch
                %362 = sbr.rel target = $region80
              $region85: #{_spectral_conv_forward.1} parent=77 // loop_exit
                _
            $region78: #{_spectral_conv_forward.1} parent=69 // pred_fallthru
              _
          $region70: #{_spectral_conv_forward.1} parent=65 // pred_fallthru
            _
          %414 = vnop
        $region66: #{_spectral_conv_forward.1} parent=15 // pred_fallthru
          _
      $region16: #{_spectral_conv_forward.1} parent=5 // pred_fallthru
        _
      %p415 = scmp.le.s32.totalorder 1, %s12
      %p416 = scmp.lt.s32.totalorder %s12, 5
      %p417 = pnand %p415, %p416
      %p418 = pneg %p417
      // Predicated region
      $region101: #{_spectral_conv_forward.1} parent=5 // pred_check
        _
      $region102: #{_spectral_conv_forward.1} parent=5 // pred_check_branch
        %420 = sbr.rel (%p417) target = $region104
      $region103: #{_spectral_conv_forward.1} parent=5 // pred_region
        %s421 = ssub.s32 %s12, 1
        %s422 = sand.u32 %s115, 1
        %s423 = sand.u32 %s115, 1
        %s424 = smul.addr %s423, 64
        %s425 = scalar_lea.vmem [#allocation2], %s424
        // Predicated region
        $region105: #{_spectral_conv_forward.1} parent=103 // pred_check
          %p426 = pneg %p128
        $region106: #{_spectral_conv_forward.1} parent=103 // pred_check_branch
          %428 = sbr.rel (%p426) target = $region108
        $region107: #{_spectral_conv_forward.1} parent=103 // pred_region
          _
        $region108: #{_spectral_conv_forward.1} parent=103 // pred_fallthru
          _
        %s429 = sand.u32 %s145, 1
        %s430 = sand.u32 %s145, 1
        %s431 = smul.addr %s430, 64
        %s432 = scalar_lea.vmem [#allocation3], %s431
        // Predicated region
        $region109: #{_spectral_conv_forward.1} parent=103 // pred_check
          %p433 = pneg %p158
        $region110: #{_spectral_conv_forward.1} parent=103 // pred_check_branch
          %435 = sbr.rel (%p433) target = $region112
        $region111: #{_spectral_conv_forward.1} parent=103 // pred_region
          _
        $region112: #{_spectral_conv_forward.1} parent=103 // pred_fallthru
          _
        %p436 = scmp.lt.s32.totalorder %s25, 1
        %s437 = scalar_select %p436, %s25, 1
        %p438 = scmp.lt.s32.totalorder %s26, 0
        %s439 = scalar_select %p438, %s26, 0
        %p440 = scmp.lt.s32.totalorder %s24, 1
        %s441 = scalar_select %p440, %s24, 1
        %s442 = smul.addr %s439, 2
        %s443 = sadd.s32 %s441, %s442
        %s444 = smul.addr %s437, 2
        %s445 = sadd.s32 %s443, %s444
        %s446 = smul.addr %s445, 8
        %s447 = scalar_lea.vmem %s0, %s446
        %p448 = pneg %p68
        %p449 = pneg %p65
        %p450 = scmp.lt.s32.totalorder %s25, 1
        %s451 = scalar_select %p450, %s25, 1
        %p452 = scmp.lt.s32.totalorder %s26, 0
        %s453 = scalar_select %p452, %s26, 0
        %p454 = scmp.lt.s32.totalorder %s24, 1
        %s455 = scalar_select %p454, %s24, 1
        %s456 = smul.addr %s453, 2
        %s457 = sadd.s32 %s455, %s456
        %s458 = smul.addr %s451, 2
        %s459 = sadd.s32 %s457, %s458
        %s460 = smul.addr %s459, 8
        %s461 = scalar_lea.vmem %s1, %s460
        %p462 = pneg %p98
        %p463 = pneg %p95
        %s464 = sand.u32 %s115, 1
        %s465 = sand.u32 %s115, 1
        %s466 = smul.addr %s465, 64
        %s467 = scalar_lea.vmem [#allocation2], %s466
        %p468 = pneg %p128
        %p469 = pneg %p125
        %s470 = sand.u32 %s145, 1
        %s471 = sand.u32 %s145, 1
        %s472 = smul.addr %s471, 64
        %s473 = scalar_lea.vmem [#allocation3], %s472
        %p474 = pneg %p158
        %p475 = pneg %p155
        %p476 = pneg %p188
        %p477 = pneg %p185
        %p478 = scmp.lt.s32.totalorder %s25, 1
        %s479 = scalar_select %p478, %s25, 1
        %p480 = scmp.lt.s32.totalorder %s23, 0
        %s481 = scalar_select %p480, %s23, 0
        %p482 = scmp.lt.s32.totalorder %s24, 1
        %s483 = scalar_select %p482, %s24, 1
        %s484 = smul.addr %s481, 2
        %s485 = sadd.s32 %s483, %s484
        %s486 = smul.addr %s479, 2
        %s487 = sadd.s32 %s485, %s486
        %s488 = smul.addr %s487, 8
        %s489 = scalar_lea.vmem %s4, %s488
        %p490 = pneg %p218
        %p491 = pneg %p215
        %p492 = scmp.lt.s32.totalorder %s25, 1
        %s493 = scalar_select %p492, %s25, 1
        %p494 = scmp.lt.s32.totalorder %s23, 0
        %s495 = scalar_select %p494, %s23, 0
        %p496 = scmp.lt.s32.totalorder %s24, 1
        %s497 = scalar_select %p496, %s24, 1
        %s498 = smul.addr %s495, 2
        %s499 = sadd.s32 %s497, %s498
        %s500 = smul.addr %s493, 2
        %s501 = sadd.s32 %s499, %s500
        %s502 = smul.addr %s501, 8
        %s503 = scalar_lea.vmem %s5, %s502
        %p504 = scmp.lt.s32.totalorder %s25, 1
        %s505 = scalar_select %p504, %s25, 1
        %p506 = scmp.lt.s32.totalorder %s26, 0
        %s507 = scalar_select %p506, %s26, 0
        %p508 = scmp.lt.s32.totalorder %s24, 1
        %s509 = scalar_select %p508, %s24, 1
        %s510 = smul.addr %s507, 2
        %s511 = sadd.s32 %s509, %s510
        %s512 = smul.addr %s505, 2
        %s513 = sadd.s32 %s511, %s512
        %s514 = smul.addr %s513, 8
        %s515 = scalar_lea.vmem %s0, %s514
        %p516 = scmp.lt.s32.totalorder %s25, 1
        %s517 = scalar_select %p516, %s25, 1
        %p518 = scmp.lt.s32.totalorder %s26, 0
        %s519 = scalar_select %p518, %s26, 0
        %p520 = scmp.lt.s32.totalorder %s24, 1
        %s521 = scalar_select %p520, %s24, 1
        %s522 = smul.addr %s519, 2
        %s523 = sadd.s32 %s521, %s522
        %s524 = smul.addr %s517, 2
        %s525 = sadd.s32 %s523, %s524
        %s526 = smul.addr %s525, 8
        %s527 = scalar_lea.vmem %s1, %s526
        %s528 = smul.u32 8, %s26
        %s529 = smul.u32 8, %s26
        %p530 = scmp.lt.s32.totalorder %s25, 1
        %s531 = scalar_select %p530, %s25, 1
        %p532 = scmp.lt.s32.totalorder %s23, 0
        %s533 = scalar_select %p532, %s23, 0
        %p534 = scmp.lt.s32.totalorder %s24, 1
        %s535 = scalar_select %p534, %s24, 1
        %s536 = smul.addr %s533, 2
        %s537 = sadd.s32 %s535, %s536
        %s538 = smul.addr %s531, 2
        %s539 = sadd.s32 %s537, %s538
        %s540 = smul.addr %s539, 8
        %s541 = scalar_lea.vmem %s4, %s540
        %p542 = scmp.lt.s32.totalorder %s25, 1
        %s543 = scalar_select %p542, %s25, 1
        %p544 = scmp.lt.s32.totalorder %s23, 0
        %s545 = scalar_select %p544, %s23, 0
        %p546 = scmp.lt.s32.totalorder %s24, 1
        %s547 = scalar_select %p546, %s24, 1
        %s548 = smul.addr %s545, 2
        %s549 = sadd.s32 %s547, %s548
        %s550 = smul.addr %s543, 2
        %s551 = sadd.s32 %s549, %s550
        %s552 = smul.addr %s551, 8
        %s553 = scalar_lea.vmem %s5, %s552
        %v554 = vld [vmem:[%s515] sm:$0x1]
        %v555 = vld [vmem:[%s527] sm:$0x1]
        %v556 = vld [vmem:[%s425] sm:$0xff]
        %v557 = vld [vmem:[%s432] sm:$0xff]
        %v558 = vlaneseq
        %v559 = vshrl.u32 %v558, 7
        %v560 = vsub.s32 0, %v559
        %v561 = vrot.slane %v554, %v560
        %v562 = vmul.f32 %v561, %v556
        %v563 = vlaneseq
        %v564 = vshrl.u32 %v563, 7
        %v565 = vsub.s32 0, %v564
        %v566 = vrot.slane %v555, %v565
        %v567 = vmul.f32 %v566, %v557
        %v568 = vsub.f32 %v562, %v567
        %v569 = vadd.f32 %v568, 0.0
        %v570 = vmul.f32 %v561, %v557
        %v571 = vmul.f32 %v566, %v556
        %v572 = vadd.f32 %v570, %v571
        %v573 = vadd.f32 %v572, 0.0
        %v574 = vld [vmem:[%s515 + $0x1] sm:$0x1]
        %v575 = vld [vmem:[%s527 + $0x1] sm:$0x1]
        %s576 = scalar_lea.vmem %s425, 8 [#allocation2]
        %v577 = vld [vmem:[%s576] sm:$0xff]
        %s578 = scalar_lea.vmem %s432, 8 [#allocation3]
        %v579 = vld [vmem:[%s578] sm:$0xff]
        %v580 = vlaneseq
        %v581 = vshrl.u32 %v580, 7
        %v582 = vsub.s32 0, %v581
        %v583 = vrot.slane %v574, %v582
        %v584 = vmul.f32 %v583, %v577
        %v585 = vlaneseq
        %v586 = vshrl.u32 %v585, 7
        %v587 = vsub.s32 0, %v586
        %v588 = vrot.slane %v575, %v587
        %v589 = vmul.f32 %v588, %v579
        %v590 = vsub.f32 %v584, %v589
        %v591 = vadd.f32 %v569, %v590
        %v592 = vmul.f32 %v583, %v579
        %v593 = vmul.f32 %v588, %v577
        %v594 = vadd.f32 %v592, %v593
        %v595 = vadd.f32 %v573, %v594
        %v596 = vld [vmem:[%s515 + $0x2] sm:$0x1]
        %v597 = vld [vmem:[%s527 + $0x2] sm:$0x1]
        %s598 = scalar_lea.vmem %s425, 16 [#allocation2]
        %v599 = vld [vmem:[%s598] sm:$0xff]
        %s600 = scalar_lea.vmem %s432, 16 [#allocation3]
        %v601 = vld [vmem:[%s600] sm:$0xff]
        %v602 = vlaneseq
        %v603 = vshrl.u32 %v602, 7
        %v604 = vsub.s32 0, %v603
        %v605 = vrot.slane %v596, %v604
        %v606 = vmul.f32 %v605, %v599
        %v607 = vlaneseq
        %v608 = vshrl.u32 %v607, 7
        %v609 = vsub.s32 0, %v608
        %v610 = vrot.slane %v597, %v609
        %v611 = vmul.f32 %v610, %v601
        %v612 = vsub.f32 %v606, %v611
        %v613 = vadd.f32 %v591, %v612
        %v614 = vmul.f32 %v605, %v601
        %v615 = vmul.f32 %v610, %v599
        %v616 = vadd.f32 %v614, %v615
        %v617 = vadd.f32 %v595, %v616
        %v618 = vld [vmem:[%s515 + $0x3] sm:$0x1]
        %v619 = vld [vmem:[%s527 + $0x3] sm:$0x1]
        %s620 = scalar_lea.vmem %s425, 24 [#allocation2]
        %v621 = vld [vmem:[%s620] sm:$0xff]
        %s622 = scalar_lea.vmem %s432, 24 [#allocation3]
        %v623 = vld [vmem:[%s622] sm:$0xff]
        %v624 = vlaneseq
        %v625 = vshrl.u32 %v624, 7
        %v626 = vsub.s32 0, %v625
        %v627 = vrot.slane %v618, %v626
        %v628 = vmul.f32 %v627, %v621
        %v629 = vlaneseq
        %v630 = vshrl.u32 %v629, 7
        %v631 = vsub.s32 0, %v630
        %v632 = vrot.slane %v619, %v631
        %v633 = vmul.f32 %v632, %v623
        %v634 = vsub.f32 %v628, %v633
        %v635 = vadd.f32 %v613, %v634
        %v636 = vmul.f32 %v627, %v623
        %v637 = vmul.f32 %v632, %v621
        %v638 = vadd.f32 %v636, %v637
        %v639 = vadd.f32 %v617, %v638
        %v640 = vld [vmem:[%s515 + $0x4] sm:$0x1]
        %v641 = vld [vmem:[%s527 + $0x4] sm:$0x1]
        %s642 = scalar_lea.vmem %s425, 32 [#allocation2]
        %v643 = vld [vmem:[%s642] sm:$0xff]
        %s644 = scalar_lea.vmem %s432, 32 [#allocation3]
        %v645 = vld [vmem:[%s644] sm:$0xff]
        %v646 = vlaneseq
        %v647 = vshrl.u32 %v646, 7
        %v648 = vsub.s32 0, %v647
        %v649 = vrot.slane %v640, %v648
        %v650 = vmul.f32 %v649, %v643
        %v651 = vlaneseq
        %v652 = vshrl.u32 %v651, 7
        %v653 = vsub.s32 0, %v652
        %v654 = vrot.slane %v641, %v653
        %v655 = vmul.f32 %v654, %v645
        %v656 = vsub.f32 %v650, %v655
        %v657 = vadd.f32 %v635, %v656
        %v658 = vmul.f32 %v649, %v645
        %v659 = vmul.f32 %v654, %v643
        %v660 = vadd.f32 %v658, %v659
        %v661 = vadd.f32 %v639, %v660
        %v662 = vld [vmem:[%s515 + $0x5] sm:$0x1]
        %v663 = vld [vmem:[%s527 + $0x5] sm:$0x1]
        %s664 = scalar_lea.vmem %s425, 40 [#allocation2]
        %v665 = vld [vmem:[%s664] sm:$0xff]
        %s666 = scalar_lea.vmem %s432, 40 [#allocation3]
        %v667 = vld [vmem:[%s666] sm:$0xff]
        %v668 = vlaneseq
        %v669 = vshrl.u32 %v668, 7
        %v670 = vsub.s32 0, %v669
        %v671 = vrot.slane %v662, %v670
        %v672 = vmul.f32 %v671, %v665
        %v673 = vlaneseq
        %v674 = vshrl.u32 %v673, 7
        %v675 = vsub.s32 0, %v674
        %v676 = vrot.slane %v663, %v675
        %v677 = vmul.f32 %v676, %v667
        %v678 = vsub.f32 %v672, %v677
        %v679 = vadd.f32 %v657, %v678
        %v680 = vmul.f32 %v671, %v667
        %v681 = vmul.f32 %v676, %v665
        %v682 = vadd.f32 %v680, %v681
        %v683 = vadd.f32 %v661, %v682
        %v684 = vld [vmem:[%s515 + $0x6] sm:$0x1]
        %v685 = vld [vmem:[%s527 + $0x6] sm:$0x1]
        %s686 = scalar_lea.vmem %s425, 48 [#allocation2]
        %v687 = vld [vmem:[%s686] sm:$0xff]
        %s688 = scalar_lea.vmem %s432, 48 [#allocation3]
        %v689 = vld [vmem:[%s688] sm:$0xff]
        %v690 = vlaneseq
        %v691 = vshrl.u32 %v690, 7
        %v692 = vsub.s32 0, %v691
        %v693 = vrot.slane %v684, %v692
        %v694 = vmul.f32 %v693, %v687
        %v695 = vlaneseq
        %v696 = vshrl.u32 %v695, 7
        %v697 = vsub.s32 0, %v696
        %v698 = vrot.slane %v685, %v697
        %v699 = vmul.f32 %v698, %v689
        %v700 = vsub.f32 %v694, %v699
        %v701 = vadd.f32 %v679, %v700
        %v702 = vmul.f32 %v693, %v689
        %v703 = vmul.f32 %v698, %v687
        %v704 = vadd.f32 %v702, %v703
        %v705 = vadd.f32 %v683, %v704
        %v706 = vld [vmem:[%s515 + $0x7] sm:$0x1]
        %v707 = vld [vmem:[%s527 + $0x7] sm:$0x1]
        %s708 = scalar_lea.vmem %s425, 56 [#allocation2]
        %v709 = vld [vmem:[%s708] sm:$0xff]
        %s710 = scalar_lea.vmem %s432, 56 [#allocation3]
        %v711 = vld [vmem:[%s710] sm:$0xff]
        %v712 = vlaneseq
        %v713 = vshrl.u32 %v712, 7
        %v714 = vsub.s32 0, %v713
        %v715 = vrot.slane %v706, %v714
        %v716 = vmul.f32 %v715, %v709
        %v717 = vlaneseq
        %v718 = vshrl.u32 %v717, 7
        %v719 = vsub.s32 0, %v718
        %v720 = vrot.slane %v707, %v719
        %v721 = vmul.f32 %v720, %v711
        %v722 = vsub.f32 %v716, %v721
        %v723 = vadd.f32 %v701, %v722
        %v724 = vmul.f32 %v715, %v711
        %v725 = vmul.f32 %v720, %v709
        %v726 = vadd.f32 %v724, %v725
        %v727 = vadd.f32 %v705, %v726
        %p728 = scmp.eq.s32.totalorder %s26, 0
        // Predicated region
        $region113: #{_spectral_conv_forward.1} parent=103 // pred_check
          %p729 = pneg %p728
        $region114: #{_spectral_conv_forward.1} parent=103 // pred_check_branch
          %731 = sbr.rel (%p729) target = $region116
        $region115: #{_spectral_conv_forward.1} parent=103 // pred_region
          %732 = vst [vmem:[%s541] sm:$0xff] %v723
          %733 = vst [vmem:[%s553] sm:$0xff] %v727
        $region116: #{_spectral_conv_forward.1} parent=103 // pred_fallthru
          _
        %p734 = scmp.ne.s32.totalorder %s26, 0
        // Predicated region
        $region117: #{_spectral_conv_forward.1} parent=103 // pred_check
          %p735 = pneg %p734
        $region118: #{_spectral_conv_forward.1} parent=103 // pred_check_branch
          %737 = sbr.rel (%p735) target = $region120
        $region119: #{_spectral_conv_forward.1} parent=103 // pred_region
          %v738 = vld [vmem:[%s541] sm:$0xff]
          %v739 = vadd.f32 %v738, %v723
          %740 = vst [vmem:[%s541] sm:$0xff] %v739
          %v741 = vld [vmem:[%s553] sm:$0xff]
          %v742 = vadd.f32 %v741, %v727
          %743 = vst [vmem:[%s553] sm:$0xff] %v742
        $region120: #{_spectral_conv_forward.1} parent=103 // pred_fallthru
          _
        %p744 = scmp.lt.s32.totalorder %s25, 1
        %s745 = scalar_select %p744, %s25, 1
        %p746 = scmp.lt.s32.totalorder %s23, 0
        %s747 = scalar_select %p746, %s23, 0
        %p748 = scmp.lt.s32.totalorder %s24, 1
        %s749 = scalar_select %p748, %s24, 1
        %s750 = smul.addr %s747, 2
        %s751 = sadd.s32 %s749, %s750
        %s752 = smul.addr %s745, 2
        %s753 = sadd.s32 %s751, %s752
        %s754 = smul.addr %s753, 8
        %s755 = scalar_lea.vmem %s4, %s754
        %p756 = scmp.lt.s32.totalorder %s25, 1
        %s757 = scalar_select %p756, %s25, 1
        %p758 = scmp.lt.s32.totalorder %s23, 0
        %s759 = scalar_select %p758, %s23, 0
        %p760 = scmp.lt.s32.totalorder %s24, 1
        %s761 = scalar_select %p760, %s24, 1
        %s762 = smul.addr %s759, 2
        %s763 = sadd.s32 %s761, %s762
        %s764 = smul.addr %s757, 2
        %s765 = sadd.s32 %s763, %s764
        %s766 = smul.addr %s765, 8
        %s767 = scalar_lea.vmem %s5, %s766
        // Predicated region
        $region121: #{_spectral_conv_forward.1} parent=103 // pred_check
          %p768 = pneg %p185
        $region122: #{_spectral_conv_forward.1} parent=103 // pred_check_branch
          %770 = sbr.rel (%p768) target = $region124
        $region123: #{_spectral_conv_forward.1} parent=103 // pred_region
          _
        $region124: #{_spectral_conv_forward.1} parent=103 // pred_fallthru
          _
        // Predicated region
        $region125: #{_spectral_conv_forward.1} parent=103 // pred_check
          %p771 = pneg %p215
        $region126: #{_spectral_conv_forward.1} parent=103 // pred_check_branch
          %773 = sbr.rel (%p771) target = $region128
        $region127: #{_spectral_conv_forward.1} parent=103 // pred_region
          _
        $region128: #{_spectral_conv_forward.1} parent=103 // pred_fallthru
          _
      $region104: #{_spectral_conv_forward.1} parent=5 // pred_fallthru
        _
      %p774 = scmp.le.s32.totalorder 2, %s12
      // Predicated region
      $region129: #{_spectral_conv_forward.1} parent=5 // pred_check
        %p775 = pneg %p774
      $region130: #{_spectral_conv_forward.1} parent=5 // pred_check_branch
        %777 = sbr.rel (%p775) target = $region132
      $region131: #{_spectral_conv_forward.1} parent=5 // pred_region
        %s778 = ssub.s32 %s12, 2
        // Predicated region
        $region133: #{_spectral_conv_forward.1} parent=131 // pred_check
          %p779 = pneg %p191
        $region134: #{_spectral_conv_forward.1} parent=131 // pred_check_branch
          %781 = sbr.rel (%p779) target = $region136
        $region135: #{_spectral_conv_forward.1} parent=131 // pred_region
          %p782 = scmp.lt.s32.totalorder %s29, 1
          %s783 = scalar_select %p782, %s29, 1
          %p784 = scmp.lt.s32.totalorder %s27, 0
          %s785 = scalar_select %p784, %s27, 0
          %p786 = scmp.lt.s32.totalorder %s28, 1
          %s787 = scalar_select %p786, %s28, 1
          %s788 = smul.addr %s785, 2
          %s789 = sadd.s32 %s787, %s788
          %s790 = smul.addr %s783, 2
          %s791 = sadd.s32 %s789, %s790
          %s792 = smul.addr %s791, 8
          %s793 = scalar_lea.vmem %s4, %s792
        $region136: #{_spectral_conv_forward.1} parent=131 // pred_fallthru
          _
        // Predicated region
        $region137: #{_spectral_conv_forward.1} parent=131 // pred_check
          %p794 = pneg %p221
        $region138: #{_spectral_conv_forward.1} parent=131 // pred_check_branch
          %796 = sbr.rel (%p794) target = $region140
        $region139: #{_spectral_conv_forward.1} parent=131 // pred_region
          %p797 = scmp.lt.s32.totalorder %s29, 1
          %s798 = scalar_select %p797, %s29, 1
          %p799 = scmp.lt.s32.totalorder %s27, 0
          %s800 = scalar_select %p799, %s27, 0
          %p801 = scmp.lt.s32.totalorder %s28, 1
          %s802 = scalar_select %p801, %s28, 1
          %s803 = smul.addr %s800, 2
          %s804 = sadd.s32 %s802, %s803
          %s805 = smul.addr %s798, 2
          %s806 = sadd.s32 %s804, %s805
          %s807 = smul.addr %s806, 8
          %s808 = scalar_lea.vmem %s5, %s807
        $region140: #{_spectral_conv_forward.1} parent=131 // pred_fallthru
          _
      $region132: #{_spectral_conv_forward.1} parent=5 // pred_fallthru
        _
    $region6: #{_spectral_conv_forward.1} parent=1 // loop_footer
      %s16 = sadd.s32 1, %s12
    $region7: #{_spectral_conv_forward.1} parent=1 // loop_footer_branch
      %11 = sbr.rel target = $region3
    $region8: #{_spectral_conv_forward.1} parent=1 // loop_exit
      _

</llo_original>
